<compile_context>
chip_gen: v5e
topology: v5e:2x2
jax: 0.10.0
libtpu: 0.0.40
codegen_flags: <defaults>
</compile_context>

<pallas_src>
import jax
import jax.numpy as jnp
from jax.experimental import pallas as pl
from jax.experimental.pallas import tpu as pltpu

EPS = 1e-5
LANE = 128


def _round_up(x, m):
    return (x + m - 1) // m * m


def _vmem_capacity_bytes():
    try:
        info = pltpu.get_tpu_info()
        cap = getattr(info, "vmem_capacity_bytes", None)
        if cap:
            return int(cap)
    except Exception:
        pass
    return 64 << 20  # conservative (v7x per-TC VMEM)


def _compiler_params(resident_bytes, streamed_bytes, semantics=("parallel",)):
    cap = _vmem_capacity_bytes()
    need = int(resident_bytes + 2 * streamed_bytes + (4 << 20))
    limit = int(min(max(need, 16 << 20), int(cap * 0.85)))
    return pltpu.CompilerParams(dimension_semantics=semantics,
                                vmem_limit_bytes=limit)


def _smem_spec():
    return pl.BlockSpec(memory_space=pltpu.MemorySpace.SMEM)


def _resident_spec(shape):
    return pl.BlockSpec(shape, lambda i: (0,) * len(shape))


def _pick_tile_m(n_pad0, hp, fp_out, cap):
    """Largest row tile that fits VMEM (resident + 2x streamed), nt >= 2."""
    feat = max(hp, fp_out)
    for tile in (512, 256, 128):
        if n_pad0 < 2 * tile:      # keep >=2 grid steps (v7x megacore sharding)
            continue
        resident = n_pad0 * feat * 2 + feat * 4
        streamed = tile * n_pad0 * 2 + tile * feat * 4 + 16 * feat * 4
        if resident + 2 * streamed + (4 << 20) <= int(cap * 0.8):
            return tile
    return 128


# ------------------------------ Pallas kernels ------------------------------

def _fused_kernel(n_ref, alpha_ref, a_ref, xw1_ref, b1_ref, g1_ref, be1_ref,
                  w2_ref, b2_ref, g2_ref, be2_ref, o_ref):
    """Whole encoder in VMEM: conv1 -> BN1(masked stats) -> PReLU1 ->
    conv2 -> BN2(masked stats) -> PReLU2."""
    f32 = jnp.float32
    n = n_ref[0]
    inv_n = 1.0 / n.astype(f32)
    rows = jax.lax.broadcasted_iota(jnp.int32, (a_ref.shape[0], 1), 0)
    mask = (rows < n).astype(f32)

    # layer 1: aggregate already-projected features
    h = jnp.dot(a_ref[...], xw1_ref[...], preferred_element_type=f32) + b1_ref[...]
    mean1 = jnp.sum(h * mask, axis=0, keepdims=True) * inv_n
    d1 = (h - mean1) * mask
    var1 = jnp.sum(d1 * d1, axis=0, keepdims=True) * inv_n
    scale1 = g1_ref[...] * jax.lax.rsqrt(var1 + EPS)
    shift1 = be1_ref[...] - mean1 * scale1
    hb = h * scale1 + shift1
    a1 = alpha_ref[0]
    hact = jnp.where(hb >= 0.0, hb, a1 * hb)

    # layer 2: project then aggregate
    y = jnp.dot(hact.astype(jnp.bfloat16), w2_ref[...], preferred_element_type=f32)
    z = jnp.dot(a_ref[...], y.astype(jnp.bfloat16),
                preferred_element_type=f32) + b2_ref[...]
    mean2 = jnp.sum(z * mask, axis=0, keepdims=True) * inv_n
    d2 = (z - mean2) * mask
    var2 = jnp.sum(d2 * d2, axis=0, keepdims=True) * inv_n
    scale2 = g2_ref[...] * jax.lax.rsqrt(var2 + EPS)
    shift2 = be2_ref[...] - mean2 * scale2
    zb = z * scale2 + shift2
    a2 = alpha_ref[1]
    o_ref[...] = jnp.where(zb >= 0.0, zb, a2 * zb)


def _agg_stats_kernel(n_ref, a_ref, y_ref, b_ref, o_ref, sum_ref, sq_ref):
    """o = A_tile @ Y + b, plus masked per-tile BN partial sums / sum-of-squares."""
    f32 = jnp.float32
    i = pl.program_id(0)
    tile_m = a_ref.shape[0]
    z = jnp.dot(a_ref[...], y_ref[...], preferred_element_type=f32) + b_ref[...]
    o_ref[...] = z.astype(o_ref.dtype)
    rows = jax.lax.broadcasted_iota(jnp.int32, (tile_m, 1), 0) + i * tile_m
    mask = (rows < n_ref[0]).astype(f32)
    zm = z * mask
    s = jnp.sum(zm, axis=0, keepdims=True)
    q = jnp.sum(zm * zm, axis=0, keepdims=True)
    sum_ref[...] = jnp.broadcast_to(s, sum_ref.shape)
    sq_ref[...] = jnp.broadcast_to(q, sq_ref.shape)


def _bn_prelu_project_kernel(h_ref, scale_ref, shift_ref, alpha_ref, w_ref, o_ref):
    """o = PReLU(BN(h)) @ W2  (folded BN scale/shift, alpha from SMEM)."""
    h = h_ref[...] * scale_ref[...] + shift_ref[...]
    a = alpha_ref[0]
    h = jnp.where(h >= 0.0, h, a * h)
    o_ref[...] = jnp.dot(h.astype(jnp.bfloat16), w_ref[...],
                         preferred_element_type=jnp.float32).astype(o_ref.dtype)


# ------------------------------ forward wrapper ------------------------------

def gcn_encoder_forward(a_norm, x, params, *, force_tiled=False):
    """a_norm: [N,N] dense normalized adjacency (f32); x: [N,F_in]; params dict."""
    f32, bf16 = jnp.float32, jnp.bfloat16
    n, f_in = x.shape
    hid = params["w1"].shape[1]
    f_out = params["w2"].shape[1]

    hp = _round_up(hid, LANE)
    fp_out = _round_up(f_out, LANE)
    cap = _vmem_capacity_bytes()
    n_pad0 = _round_up(max(n, LANE), LANE)

    # Project once in exact f32 so both aggregations are pure A @ Y + b.
    xw1 = x.astype(f32) @ params["w1"].astype(f32)                  # (n, hid)

    def padded_params(n_pad):
        a_pad = jnp.zeros((n_pad, n_pad), bf16).at[:n, :n].set(a_norm.astype(bf16))
        xw1_p = jnp.zeros((n_pad, hp), bf16).at[:n, :hid].set(xw1.astype(bf16))
        w2 = jnp.zeros((hp, fp_out), bf16).at[:hid, :f_out].set(params["w2"].astype(bf16))
        b1 = jnp.zeros((1, hp), f32).at[:, :hid].set(params["b1"])
        g1 = jnp.ones((1, hp), f32).at[:, :hid].set(params["g1"])
        be1 = jnp.zeros((1, hp), f32).at[:, :hid].set(params["be1"])
        b2 = jnp.zeros((1, fp_out), f32).at[:, :f_out].set(params["b2"])
        g2 = jnp.ones((1, fp_out), f32).at[:, :f_out].set(params["g2"])
        be2 = jnp.zeros((1, fp_out), f32).at[:, :f_out].set(params["be2"])
        return a_pad, xw1_p, w2, b1, g1, be1, b2, g2, be2

    n_arr = jnp.array([n], jnp.int32)

    # ---------------- fused small-graph path (single launch) ----------------
    fused_bytes = (n_pad0 * n_pad0 * 2 + n_pad0 * hp * 2 + hp * fp_out * 2
                   + 3 * n_pad0 * hp * 4 + 3 * n_pad0 * fp_out * 4)
    if (not force_tiled) and fused_bytes <= int(cap * 0.45):
        n_pad = n_pad0
        a_pad, xw1_p, w2, b1, g1, be1, b2, g2, be2 = padded_params(n_pad)
        alphas = jnp.stack([params["p1"].reshape(()),
                            params["p2"].reshape(())]).astype(f32)
        out_pad = pl.pallas_call(
            _fused_kernel,
            out_shape=jax.ShapeDtypeStruct((n_pad, fp_out), f32),
            grid=(1,),
            in_specs=[_smem_spec(), _smem_spec(),
                      _resident_spec(a_pad.shape), _resident_spec(xw1_p.shape),
                      _resident_spec(b1.shape), _resident_spec(g1.shape),
                      _resident_spec(be1.shape),
                      _resident_spec(w2.shape), _resident_spec(b2.shape),
                      _resident_spec(g2.shape), _resident_spec(be2.shape)],
            out_specs=pl.BlockSpec((n_pad, fp_out), lambda i: (0, 0)),
            compiler_params=_compiler_params(fused_bytes, 0, ("arbitrary",)),
        )(n_arr, alphas, a_pad, xw1_p, b1, g1, be1, w2, b2, g2, be2)
        return out_pad[:n, :f_out]

    # ---------------- tiled large-graph path ----------------
    # TODO(synk): add K-tiled (column-panel) fallback for graphs whose
    # (TILE_M, n_pad) A panel + resident Y no longer fit v7x's 64 MiB VMEM.
    tile_m = _pick_tile_m(n_pad0, hp, fp_out, cap)
    n_pad = _round_up(n_pad0, tile_m)
    nt = n_pad // tile_m

    a_pad, xw1_p, w2, b1, g1, be1, b2, g2, be2 = padded_params(n_pad)
    p1 = params["p1"].reshape((1,)).astype(f32)

    row_a = pl.BlockSpec((tile_m, n_pad), lambda i: (i, 0))
    stats_spec_h = pl.BlockSpec((8, hp), lambda i: (i, 0))
    stats_spec_o = pl.BlockSpec((8, fp_out), lambda i: (i, 0))
    inv_n = 1.0 / n

    # layer 1 aggregation (+ fused masked BN1 partial stats)
    resident1 = n_pad * hp * 2 + hp * 4
    streamed1 = tile_m * n_pad * 2 + tile_m * hp * 4 + 16 * hp * 4
    h_pre, s1, q1 = pl.pallas_call(
        _agg_stats_kernel,
        out_shape=(jax.ShapeDtypeStruct((n_pad, hp), f32),
                   jax.ShapeDtypeStruct((nt * 8, hp), f32),
                   jax.ShapeDtypeStruct((nt * 8, hp), f32)),
        grid=(nt,),
        in_specs=[_smem_spec(), row_a, _resident_spec(xw1_p.shape),
                  _resident_spec(b1.shape)],
        out_specs=(pl.BlockSpec((tile_m, hp), lambda i: (i, 0)),
                   stats_spec_h, stats_spec_h),
        compiler_params=_compiler_params(resident1, streamed1),
    )(n_arr, a_pad, xw1_p, b1)

    s1 = jnp.sum(s1.reshape(nt, 8, hp)[:, 0, :], axis=0, keepdims=True)
    q1 = jnp.sum(q1.reshape(nt, 8, hp)[:, 0, :], axis=0, keepdims=True)
    mean1 = s1 * inv_n
    var1 = jnp.maximum(q1 * inv_n - mean1 * mean1, 0.0)
    scale1 = g1 * jax.lax.rsqrt(var1 + EPS)
    shift1 = be1 - mean1 * scale1

    # BN1 + PReLU1 + project to F_out (y written in bf16: halves HBM traffic)
    resident2 = 2 * hp * 4 + hp * fp_out * 2 + 64
    streamed2 = tile_m * hp * 4 + tile_m * fp_out * 2
    y = pl.pallas_call(
        _bn_prelu_project_kernel,
        out_shape=jax.ShapeDtypeStruct((n_pad, fp_out), bf16),
        grid=(nt,),
        in_specs=[pl.BlockSpec((tile_m, hp), lambda i: (i, 0)),
                  _resident_spec(scale1.shape), _resident_spec(shift1.shape),
                  _smem_spec(), _resident_spec(w2.shape)],
        out_specs=pl.BlockSpec((tile_m, fp_out), lambda i: (i, 0)),
        compiler_params=_compiler_params(resident2, streamed2),
    )(h_pre, scale1, shift1, p1, w2)

    # layer 2 aggregation (+ fused masked BN2 partial stats)
    resident3 = n_pad * fp_out * 2 + fp_out * 4
    streamed3 = tile_m * n_pad * 2 + tile_m * fp_out * 4 + 16 * fp_out * 4
    z_pre, s2, q2 = pl.pallas_call(
        _agg_stats_kernel,
        out_shape=(jax.ShapeDtypeStruct((n_pad, fp_out), f32),
                   jax.ShapeDtypeStruct((nt * 8, fp_out), f32),
                   jax.ShapeDtypeStruct((nt * 8, fp_out), f32)),
        grid=(nt,),
        in_specs=[_smem_spec(), row_a, _resident_spec(y.shape),
                  _resident_spec(b2.shape)],
        out_specs=(pl.BlockSpec((tile_m, fp_out), lambda i: (i, 0)),
                   stats_spec_o, stats_spec_o),
        compiler_params=_compiler_params(resident3, streamed3),
    )(n_arr, a_pad, y, b2)

    # BN2 + PReLU2 on the true [n, f_out] slice in plain JAX (4th kernel dropped)
    zv = z_pre[:n, :f_out]
    s2 = jnp.sum(s2.reshape(nt, 8, fp_out)[:, 0, :f_out], axis=0, keepdims=True)
    q2 = jnp.sum(q2.reshape(nt, 8, fp_out)[:, 0, :f_out], axis=0, keepdims=True)
    mean2 = s2 * inv_n
    var2 = jnp.maximum(q2 * inv_n - mean2 * mean2, 0.0)
    zbn = (zv - mean2) * jax.lax.rsqrt(var2 + EPS) * params["g2"] + params["be2"]
    return jnp.where(zbn >= 0.0, zbn, params["p2"].reshape(()) * zbn)


# ------------------------------ plain-JAX glue -------------------------------
# TODO(synk): true sparse (edge_index) aggregation would need a gather/DMA
# kernel; we build a dense normalized adjacency in JAX glue instead.

def build_norm_adjacency(edge_index, num_nodes):
    """Dense D^-1/2 (A + I) D^-1/2 with PyG scatter-add semantics."""
    src, dst = edge_index[0], edge_index[1]
    adj = jnp.zeros((num_nodes, num_nodes), jnp.float32)
    adj = adj.at[dst, src].add(1.0)
    diag = jnp.diagonal(adj)
    adj = adj + jnp.diag(jnp.where(diag == 0.0, 1.0, 0.0))
    deg = jnp.sum(adj, axis=1)
    dinv = jax.lax.rsqrt(jnp.maximum(deg, 1e-12))
    return adj * dinv[:, None] * dinv[None, :]


def glorot(key, shape):
    fan_in, fan_out = shape
    limit = jnp.sqrt(6.0 / (fan_in + fan_out))
    return jax.random.uniform(key, shape, jnp.float32, -limit, limit)


def init_params(key, input_size, hidden_size, output_size):
    k1, k2 = jax.random.split(key)
    return {
        "w1": glorot(k1, (input_size, hidden_size)),
        "b1": jnp.zeros((1, hidden_size), jnp.float32),
        "g1": jnp.ones((1, hidden_size), jnp.float32),
        "be1": jnp.zeros((1, hidden_size), jnp.float32),
        "p1": jnp.full((1,), 0.25, jnp.float32),
        "w2": glorot(k2, (hidden_size, output_size)),
        "b2": jnp.zeros((1, output_size), jnp.float32),
        "g2": jnp.ones((1, output_size), jnp.float32),
        "be2": jnp.zeros((1, output_size), jnp.float32),
        "p2": jnp.full((1,), 0.25, jnp.float32),
    }


def reference_forward(a_norm, x, params):
    """Pure f32 JAX reference matching the PyTorch module semantics."""
    h = a_norm @ (x @ params["w1"]) + params["b1"]
    m1 = jnp.mean(h, axis=0, keepdims=True)
    v1 = jnp.mean(jnp.square(h - m1), axis=0, keepdims=True)
    h = (h - m1) * jax.lax.rsqrt(v1 + EPS) * params["g1"] + params["be1"]
    h = jnp.where(h >= 0.0, h, params["p1"][0] * h)
    z = a_norm @ (h @ params["w2"]) + params["b2"]
    m2 = jnp.mean(z, axis=0, keepdims=True)
    v2 = jnp.mean(jnp.square(z - m2), axis=0, keepdims=True)
    z = (z - m2) * jax.lax.rsqrt(v2 + EPS) * params["g2"] + params["be2"]
    return jnp.where(z >= 0.0, z, params["p2"][0] * z)


if __name__ == "__main__":
    key = jax.random.PRNGKey(0)
    k_x, k_e1, k_e2, k_p = jax.random.split(key, 4)

    # num_nodes deliberately NOT a multiple of 128: exercises row padding and
    # the masked in-kernel BatchNorm statistics.
    num_nodes = 200
    num_edges = 400
    input_size, hidden_size, output_size = 16, 32, 16

    x = jax.random.normal(k_x, (num_nodes, input_size), jnp.float32)
    src = jax.random.randint(k_e1, (num_edges,), 0, num_nodes)
    dst = jax.random.randint(k_e2, (num_edges,), 0, num_nodes)
    edge_index = jnp.stack(
        [jnp.concatenate([src, dst]), jnp.concatenate([dst, src])], axis=0
    )  # undirected, [2, 2E]

    a_norm = build_norm_adjacency(edge_index, num_nodes)
    params = init_params(k_p, input_size, hidden_size, output_size)
    ref = reference_forward(a_norm, x, params)

    # fused small-graph fast path
    out_fused = gcn_encoder_forward(a_norm, x, params)
    jax.block_until_ready(out_fused)
    assert out_fused.shape == (num_nodes, output_size)
    err_f = float(jnp.max(jnp.abs(out_fused - ref)))
    assert err_f < 0.1, f"fused path max |kernel - reference| = {err_f}"

    # row-tiled large-graph path (forced, nt = 2)
    out_tiled = gcn_encoder_forward(a_norm, x, params, force_tiled=True)
    jax.block_until_ready(out_tiled)
    assert out_tiled.shape == (num_nodes, output_size)
    err_t = float(jnp.max(jnp.abs(out_tiled - ref)))
    assert err_t < 0.1, f"tiled path max |kernel - reference| = {err_t}"

    print("KERNEL_OK")
</pallas_src>

<mosaic_0001>
module attributes {stable_mosaic.version = 11 : i64} {
  func.func @_fused_kernel(%arg0: i32, %arg1: memref<1xi32, #tpu.memory_space<smem>>, %arg2: memref<2xf32, #tpu.memory_space<smem>>, %arg3: memref<256x256xbf16, #tpu.memory_space<vmem>>, %arg4: memref<256x128xbf16, #tpu.memory_space<vmem>>, %arg5: memref<1x128xf32, #tpu.memory_space<vmem>>, %arg6: memref<1x128xf32, #tpu.memory_space<vmem>>, %arg7: memref<1x128xf32, #tpu.memory_space<vmem>>, %arg8: memref<128x128xbf16, #tpu.memory_space<vmem>>, %arg9: memref<1x128xf32, #tpu.memory_space<vmem>>, %arg10: memref<1x128xf32, #tpu.memory_space<vmem>>, %arg11: memref<1x128xf32, #tpu.memory_space<vmem>>, %arg12: memref<256x128xf32, #tpu.memory_space<vmem>>) attributes {dimension_semantics = [#tpu.dimension_semantics<arbitrary>], iteration_bounds = array<i64: 1>, scalar_prefetch = 0 : i64, scratch_operands = 0 : i64, tpu.core_type = #tpu.core_type<tc>, window_params = [{transform_indices = @transform_0, window_bounds = array<i64: 1>}, {transform_indices = @transform_1, window_bounds = array<i64: 2>}, {pipeline_mode = #tpu.pipeline_mode<synchronous>, transform_indices = @transform_2, window_bounds = array<i64: 256, 256>}, {pipeline_mode = #tpu.pipeline_mode<synchronous>, transform_indices = @transform_3, window_bounds = array<i64: 256, 128>}, {pipeline_mode = #tpu.pipeline_mode<synchronous>, transform_indices = @transform_4, window_bounds = array<i64: 1, 128>}, {pipeline_mode = #tpu.pipeline_mode<synchronous>, transform_indices = @transform_5, window_bounds = array<i64: 1, 128>}, {pipeline_mode = #tpu.pipeline_mode<synchronous>, transform_indices = @transform_6, window_bounds = array<i64: 1, 128>}, {pipeline_mode = #tpu.pipeline_mode<synchronous>, transform_indices = @transform_7, window_bounds = array<i64: 128, 128>}, {pipeline_mode = #tpu.pipeline_mode<synchronous>, transform_indices = @transform_8, window_bounds = array<i64: 1, 128>}, {pipeline_mode = #tpu.pipeline_mode<synchronous>, transform_indices = @transform_9, window_bounds = array<i64: 1, 128>}, {pipeline_mode = #tpu.pipeline_mode<synchronous>, transform_indices = @transform_10, window_bounds = array<i64: 1, 128>}, {pipeline_mode = #tpu.pipeline_mode<synchronous>, transform_indices = @transform_11, window_bounds = array<i64: 256, 128>}]} {
    %c0 = arith.constant 0 : index
    %0 = memref.load %arg1[%c0] : memref<1xi32, #tpu.memory_space<smem>>
    %1 = arith.sitofp %0 : i32 to f32
    %cst = arith.constant 1.000000e+00 : f32
    %2 = arith.divf %cst, %1 : f32
    %3 = tpu.iota {dimensions = array<i32: 0>} : vector<256x1xi32>
    %4 = vector.broadcast %0 : i32 to vector<256x1xi32>
    %5 = arith.cmpi slt, %3, %4 : vector<256x1xi32>
    %6 = arith.extui %5 : vector<256x1xi1> to vector<256x1xi32>
    %7 = arith.sitofp %6 : vector<256x1xi32> to vector<256x1xf32>
    %c0_0 = arith.constant 0 : index
    %c0_1 = arith.constant 0 : index
    %8 = vector.load %arg3[%c0_0, %c0_1] : memref<256x256xbf16, #tpu.memory_space<vmem>>, vector<256x256xbf16>
    %c0_2 = arith.constant 0 : index
    %c0_3 = arith.constant 0 : index
    %9 = vector.load %arg4[%c0_2, %c0_3] : memref<256x128xbf16, #tpu.memory_space<vmem>>, vector<256x128xbf16>
    %cst_4 = arith.constant dense<0.000000e+00> : vector<256x128xf32>
    %10 = tpu.matmul %8, %9, %cst_4 {dimension_numbers = #tpu.dot_dimension_numbers<[1], [0], [0], [1], [0, 0, 1, 1], [], []>} : vector<256x256xbf16>, vector<256x128xbf16>, vector<256x128xf32> -> vector<256x128xf32>
    %c0_5 = arith.constant 0 : index
    %c0_6 = arith.constant 0 : index
    %11 = vector.load %arg5[%c0_5, %c0_6] : memref<1x128xf32, #tpu.memory_space<vmem>>, vector<1x128xf32>
    %12 = vector.broadcast %11 : vector<1x128xf32> to vector<256x128xf32>
    %13 = arith.addf %10, %12 : vector<256x128xf32>
    %14 = vector.broadcast %7 : vector<256x1xf32> to vector<256x128xf32>
    %15 = arith.mulf %13, %14 : vector<256x128xf32>
    %cst_7 = arith.constant dense<0.000000e+00> : vector<128xf32>
    %16 = vector.multi_reduction <add>, %15, %cst_7 [0] : vector<256x128xf32> to vector<128xf32>
    %17 = vector.shape_cast %16 : vector<128xf32> to vector<1x128xf32>
    %18 = vector.broadcast %2 : f32 to vector<1x128xf32>
    %19 = arith.mulf %17, %18 : vector<1x128xf32>
    %20 = vector.broadcast %19 : vector<1x128xf32> to vector<256x128xf32>
    %21 = arith.subf %13, %20 : vector<256x128xf32>
    %22 = vector.broadcast %7 : vector<256x1xf32> to vector<256x128xf32>
    %23 = arith.mulf %21, %22 : vector<256x128xf32>
    %24 = arith.mulf %23, %23 : vector<256x128xf32>
    %cst_8 = arith.constant dense<0.000000e+00> : vector<128xf32>
    %25 = vector.multi_reduction <add>, %24, %cst_8 [0] : vector<256x128xf32> to vector<128xf32>
    %26 = vector.shape_cast %25 : vector<128xf32> to vector<1x128xf32>
    %27 = vector.broadcast %2 : f32 to vector<1x128xf32>
    %28 = arith.mulf %26, %27 : vector<1x128xf32>
    %c0_9 = arith.constant 0 : index
    %c0_10 = arith.constant 0 : index
    %29 = vector.load %arg6[%c0_9, %c0_10] : memref<1x128xf32, #tpu.memory_space<vmem>>, vector<1x128xf32>
    %cst_11 = arith.constant 9.99999974E-6 : f32
    %30 = vector.broadcast %cst_11 : f32 to vector<1x128xf32>
    %31 = arith.addf %28, %30 : vector<1x128xf32>
    %32 = math.rsqrt %31 : vector<1x128xf32>
    %33 = arith.mulf %29, %32 : vector<1x128xf32>
    %c0_12 = arith.constant 0 : index
    %c0_13 = arith.constant 0 : index
    %34 = vector.load %arg7[%c0_12, %c0_13] : memref<1x128xf32, #tpu.memory_space<vmem>>, vector<1x128xf32>
    %35 = arith.mulf %19, %33 : vector<1x128xf32>
    %36 = arith.subf %34, %35 : vector<1x128xf32>
    %37 = vector.broadcast %33 : vector<1x128xf32> to vector<256x128xf32>
    %38 = arith.mulf %13, %37 : vector<256x128xf32>
    %39 = vector.broadcast %36 : vector<1x128xf32> to vector<256x128xf32>
    %40 = arith.addf %38, %39 : vector<256x128xf32>
    %c0_14 = arith.constant 0 : index
    %41 = memref.load %arg2[%c0_14] : memref<2xf32, #tpu.memory_space<smem>>
    %cst_15 = arith.constant 0.000000e+00 : f32
    %42 = vector.broadcast %cst_15 : f32 to vector<256x128xf32>
    %43 = arith.cmpf oge, %40, %42 : vector<256x128xf32>
    %44 = vector.broadcast %41 : f32 to vector<256x128xf32>
    %45 = arith.mulf %44, %40 : vector<256x128xf32>
    %46 = arith.select %43, %40, %45 : vector<256x128xi1>, vector<256x128xf32>
    %47 = arith.truncf %46 : vector<256x128xf32> to vector<256x128xbf16>
    %c0_16 = arith.constant 0 : index
    %c0_17 = arith.constant 0 : index
    %48 = vector.load %arg8[%c0_16, %c0_17] : memref<128x128xbf16, #tpu.memory_space<vmem>>, vector<128x128xbf16>
    %cst_18 = arith.constant dense<0.000000e+00> : vector<256x128xf32>
    %49 = tpu.matmul %47, %48, %cst_18 {dimension_numbers = #tpu.dot_dimension_numbers<[1], [0], [0], [1], [0, 0, 1, 1], [], []>} : vector<256x128xbf16>, vector<128x128xbf16>, vector<256x128xf32> -> vector<256x128xf32>
    %c0_19 = arith.constant 0 : index
    %c0_20 = arith.constant 0 : index
    %50 = vector.load %arg3[%c0_19, %c0_20] : memref<256x256xbf16, #tpu.memory_space<vmem>>, vector<256x256xbf16>
    %51 = arith.truncf %49 : vector<256x128xf32> to vector<256x128xbf16>
    %cst_21 = arith.constant dense<0.000000e+00> : vector<256x128xf32>
    %52 = tpu.matmul %50, %51, %cst_21 {dimension_numbers = #tpu.dot_dimension_numbers<[1], [0], [0], [1], [0, 0, 1, 1], [], []>} : vector<256x256xbf16>, vector<256x128xbf16>, vector<256x128xf32> -> vector<256x128xf32>
    %c0_22 = arith.constant 0 : index
    %c0_23 = arith.constant 0 : index
    %53 = vector.load %arg9[%c0_22, %c0_23] : memref<1x128xf32, #tpu.memory_space<vmem>>, vector<1x128xf32>
    %54 = vector.broadcast %53 : vector<1x128xf32> to vector<256x128xf32>
    %55 = arith.addf %52, %54 : vector<256x128xf32>
    %56 = vector.broadcast %7 : vector<256x1xf32> to vector<256x128xf32>
    %57 = arith.mulf %55, %56 : vector<256x128xf32>
    %cst_24 = arith.constant dense<0.000000e+00> : vector<128xf32>
    %58 = vector.multi_reduction <add>, %57, %cst_24 [0] : vector<256x128xf32> to vector<128xf32>
    %59 = vector.shape_cast %58 : vector<128xf32> to vector<1x128xf32>
    %60 = vector.broadcast %2 : f32 to vector<1x128xf32>
    %61 = arith.mulf %59, %60 : vector<1x128xf32>
    %62 = vector.broadcast %61 : vector<1x128xf32> to vector<256x128xf32>
    %63 = arith.subf %55, %62 : vector<256x128xf32>
    %64 = vector.broadcast %7 : vector<256x1xf32> to vector<256x128xf32>
    %65 = arith.mulf %63, %64 : vector<256x128xf32>
    %66 = arith.mulf %65, %65 : vector<256x128xf32>
    %cst_25 = arith.constant dense<0.000000e+00> : vector<128xf32>
    %67 = vector.multi_reduction <add>, %66, %cst_25 [0] : vector<256x128xf32> to vector<128xf32>
    %68 = vector.shape_cast %67 : vector<128xf32> to vector<1x128xf32>
    %69 = vector.broadcast %2 : f32 to vector<1x128xf32>
    %70 = arith.mulf %68, %69 : vector<1x128xf32>
    %c0_26 = arith.constant 0 : index
    %c0_27 = arith.constant 0 : index
    %71 = vector.load %arg10[%c0_26, %c0_27] : memref<1x128xf32, #tpu.memory_space<vmem>>, vector<1x128xf32>
    %cst_28 = arith.constant 9.99999974E-6 : f32
    %72 = vector.broadcast %cst_28 : f32 to vector<1x128xf32>
    %73 = arith.addf %70, %72 : vector<1x128xf32>
    %74 = math.rsqrt %73 : vector<1x128xf32>
    %75 = arith.mulf %71, %74 : vector<1x128xf32>
    %c0_29 = arith.constant 0 : index
    %c0_30 = arith.constant 0 : index
    %76 = vector.load %arg11[%c0_29, %c0_30] : memref<1x128xf32, #tpu.memory_space<vmem>>, vector<1x128xf32>
    %77 = arith.mulf %61, %75 : vector<1x128xf32>
    %78 = arith.subf %76, %77 : vector<1x128xf32>
    %79 = vector.broadcast %75 : vector<1x128xf32> to vector<256x128xf32>
    %80 = arith.mulf %55, %79 : vector<256x128xf32>
    %81 = vector.broadcast %78 : vector<1x128xf32> to vector<256x128xf32>
    %82 = arith.addf %80, %81 : vector<256x128xf32>
    %c1 = arith.constant 1 : index
    %83 = memref.load %arg2[%c1] : memref<2xf32, #tpu.memory_space<smem>>
    %cst_31 = arith.constant 0.000000e+00 : f32
    %84 = vector.broadcast %cst_31 : f32 to vector<256x128xf32>
    %85 = arith.cmpf oge, %82, %84 : vector<256x128xf32>
    %86 = vector.broadcast %83 : f32 to vector<256x128xf32>
    %87 = arith.mulf %86, %82 : vector<256x128xf32>
    %88 = arith.select %85, %82, %87 : vector<256x128xi1>, vector<256x128xf32>
    %c0_32 = arith.constant 0 : index
    %c0_33 = arith.constant 0 : index
    %89 = vector.load %arg12[%c0_32, %c0_33] : memref<256x128xf32, #tpu.memory_space<vmem>>, vector<256x128xf32>
    tpu.vector_store %arg12[%c0_32, %c0_33], %88 {strides = array<i32>} : memref<256x128xf32, #tpu.memory_space<vmem>>, vector<256x128xf32>,
    return
  }
  func.func @transform_0(%arg0: i32) -> i32 {
    %c0_i32 = arith.constant 0 : i32
    %c0_i32_0 = arith.constant 0 : i32
    return %c0_i32 : i32
  }
  func.func @transform_1(%arg0: i32) -> i32 {
    %c0_i32 = arith.constant 0 : i32
    %c0_i32_0 = arith.constant 0 : i32
    return %c0_i32 : i32
  }
  func.func @transform_2(%arg0: i32) -> (i32, i32) {
    %c0_i32 = arith.constant 0 : i32
    %c0_i32_0 = arith.constant 0 : i32
    %c0_i32_1 = arith.constant 0 : i32
    return %c0_i32, %c0_i32_0 : i32, i32
  }
  func.func @transform_3(%arg0: i32) -> (i32, i32) {
    %c0_i32 = arith.constant 0 : i32
    %c0_i32_0 = arith.constant 0 : i32
    %c0_i32_1 = arith.constant 0 : i32
    return %c0_i32, %c0_i32_0 : i32, i32
  }
  func.func @transform_4(%arg0: i32) -> (i32, i32) {
    %c0_i32 = arith.constant 0 : i32
    %c0_i32_0 = arith.constant 0 : i32
    %c0_i32_1 = arith.constant 0 : i32
    return %c0_i32, %c0_i32_0 : i32, i32
  }
  func.func @transform_5(%arg0: i32) -> (i32, i32) {
    %c0_i32 = arith.constant 0 : i32
    %c0_i32_0 = arith.constant 0 : i32
    %c0_i32_1 = arith.constant 0 : i32
    return %c0_i32, %c0_i32_0 : i32, i32
  }
  func.func @transform_6(%arg0: i32) -> (i32, i32) {
    %c0_i32 = arith.constant 0 : i32
    %c0_i32_0 = arith.constant 0 : i32
    %c0_i32_1 = arith.constant 0 : i32
    return %c0_i32, %c0_i32_0 : i32, i32
  }
  func.func @transform_7(%arg0: i32) -> (i32, i32) {
    %c0_i32 = arith.constant 0 : i32
    %c0_i32_0 = arith.constant 0 : i32
    %c0_i32_1 = arith.constant 0 : i32
    return %c0_i32, %c0_i32_0 : i32, i32
  }
  func.func @transform_8(%arg0: i32) -> (i32, i32) {
    %c0_i32 = arith.constant 0 : i32
    %c0_i32_0 = arith.constant 0 : i32
    %c0_i32_1 = arith.constant 0 : i32
    return %c0_i32, %c0_i32_0 : i32, i32
  }
  func.func @transform_9(%arg0: i32) -> (i32, i32) {
    %c0_i32 = arith.constant 0 : i32
    %c0_i32_0 = arith.constant 0 : i32
    %c0_i32_1 = arith.constant 0 : i32
    return %c0_i32, %c0_i32_0 : i32, i32
  }
  func.func @transform_10(%arg0: i32) -> (i32, i32) {
    %c0_i32 = arith.constant 0 : i32
    %c0_i32_0 = arith.constant 0 : i32
    %c0_i32_1 = arith.constant 0 : i32
    return %c0_i32, %c0_i32_0 : i32, i32
  }
  func.func @transform_11(%arg0: i32) -> (i32, i32) {
    %c0_i32 = arith.constant 0 : i32
    %c0_i32_0 = arith.constant 0 : i32
    %c0_i32_1 = arith.constant 0 : i32
    return %c0_i32, %c0_i32_0 : i32, i32
  }
}

</mosaic_0001>

<llo_original>
// kernel: tpu_custom_call.1
$region0: #{tpu_custom_call.1}
  #allocation0 [shape = 'u32[]', space=smem, size = 0x4, offset = 0x4, fixed_abs, tag = 'smem constant byte address 0x4 - core index']
  #allocation1 [shape = 'u32[72,128]{1,0:T(1,128)}', space=vmem, size = 0x9000, scoped, tag = 'internal scratch']
  #allocation2 [shape = 's32[1]{0:T(128)S(6)}', space=smem, size = 0x200, scoped, tag = 'scoped memory for tpu_custom_call.1']
  %s0 = inlined_call_operand.<no memory space> [shape: s32[1], index: 0, kind: input, shape index: {}]
  %s1 = inlined_call_operand.vmem [shape: f32[2], index: 1, kind: input, shape index: {}]
  %s2 = inlined_call_operand.hbm [shape: bf16[256,256], index: 2, kind: input, shape index: {}]
  %s3 = inlined_call_operand.hbm [shape: bf16[256,128], index: 3, kind: input, shape index: {}]
  %s4 = inlined_call_operand.vmem [shape: f32[1,128], index: 4, kind: input, shape index: {}]
  %s5 = inlined_call_operand.vmem [shape: f32[1,128], index: 5, kind: input, shape index: {}]
  %s6 = inlined_call_operand.vmem [shape: f32[1,128], index: 6, kind: input, shape index: {}]
  %s7 = inlined_call_operand.hbm [shape: bf16[128,128], index: 7, kind: input, shape index: {}]
  %s8 = inlined_call_operand.vmem [shape: f32[1,128], index: 8, kind: input, shape index: {}]
  %s9 = inlined_call_operand.vmem [shape: f32[1,128], index: 9, kind: input, shape index: {}]
  %s10 = inlined_call_operand.vmem [shape: f32[1,128], index: 10, kind: input, shape index: {}]
  %s11 = inlined_call_operand.hbm [shape: f32[256,128], index: 11, kind: output, shape index: {}]
  %s12 = sld [smem:[#allocation0]]
  $region70: #{tpu_custom_call.1} parent=0
    _
  %s14 = ssub.s32 1, %s12
  %s15 = scalar_select 0, %s14, %s12
  %16 = sst [smem:[#allocation2]] %s0
  $region1: #{tpu_custom_call.1} parent=0
    #allocation3 [shape = 'u8[512]{0}', space=smem, size = 0x200, scoped, tag = 'input window, operand 1, single buffered']
    #allocation4 [shape = 's32[1]{0}', space=sflag, size = 0x4, scoped, tag = 'scoped memory for tpu_custom_call.1']
    #allocation5 [shape = 's32[1]{0}', space=sflag, size = 0x4, scoped, tag = 'scoped memory for tpu_custom_call.1']
    #allocation6 [shape = 's32[1]{0}', space=sflag, size = 0x4, scoped, tag = 'scoped memory for tpu_custom_call.1']
    #allocation7 [shape = 'u8[131072]{0}', space=vmem, size = 0x20000, scoped, tag = 'input window, operand 2, single buffered']
    #allocation8 [shape = 'u8[65536]{0}', space=vmem, size = 0x10000, scoped, tag = 'input window, operand 3, single buffered']
    #allocation9 [shape = 's32[1]{0}', space=sflag, size = 0x4, scoped, tag = 'scoped memory for tpu_custom_call.1']
    #allocation10 [shape = 'u8[32768]{0}', space=vmem, size = 0x8000, scoped, tag = 'input window, operand 7, single buffered']
    #allocation11 [shape = 'u8[131072]{0}', space=vmem, size = 0x20000, scoped, tag = 'output window, operand 0, single buffered']
    %17 = vsyncpa [#allocation6], 0
    %18 = vsyncpa [#allocation4], 0
    %19 = vsyncpa [#allocation9], 0
    %20 = vsyncpa [#allocation5], 0
    // Predicated region
    $region2: #{tpu_custom_call.1} parent=1 // pred_check
      _
    $region3: #{tpu_custom_call.1} parent=1 // pred_check_branch
      %22 = sbr.rel (0) target = $region5
    $region4: #{tpu_custom_call.1} parent=1 // pred_region
      _
    $region5: #{tpu_custom_call.1} parent=1 // pred_fallthru
      _
    // Predicated region
    $region6: #{tpu_custom_call.1} parent=1 // pred_check
      _
    $region7: #{tpu_custom_call.1} parent=1 // pred_check_branch
      %24 = sbr.rel (0) target = $region9
    $region8: #{tpu_custom_call.1} parent=1 // pred_region
      %26 = vsyncadd [#allocation6], 0
      %s28 = sshll.u32 %s1, 4
      %s29 = int_to_ptr.vmem [resolvable:$true] %s28
      %31 = dma.vmem_to_smem %s29, 16, [#allocation3], [#allocation6]
    $region9: #{tpu_custom_call.1} parent=1 // pred_fallthru
      _
    // Predicated region
    $region10: #{tpu_custom_call.1} parent=1 // pred_check
      _
    $region11: #{tpu_custom_call.1} parent=1 // pred_check_branch
      %33 = sbr.rel (0) target = $region13
    $region12: #{tpu_custom_call.1} parent=1 // pred_region
      %35 = vsyncadd [#allocation4], 0
      %s36 = sshll.u32 %s2, 4
      %s37 = int_to_ptr.hbm [resolvable:$true] %s36
      %s38 = sshll.u32 [#allocation7], 4
      %s39 = int_to_ptr.vmem [resolvable:$true] %s38
      %44 = dma.hbm_to_vmem [thread:$0]  %s37, 4096, %s39, [#allocation4], 128, 128, 8
    $region13: #{tpu_custom_call.1} parent=1 // pred_fallthru
      _
    // Predicated region
    $region14: #{tpu_custom_call.1} parent=1 // pred_check
      _
    $region15: #{tpu_custom_call.1} parent=1 // pred_check_branch
      %46 = sbr.rel (0) target = $region17
    $region16: #{tpu_custom_call.1} parent=1 // pred_region
      %48 = vsyncadd [#allocation9], 0
      %s49 = sshll.u32 %s3, 4
      %s50 = int_to_ptr.hbm [resolvable:$true] %s49
      %s51 = sshll.u32 [#allocation8], 4
      %s52 = int_to_ptr.vmem [resolvable:$true] %s51
      %57 = dma.hbm_to_vmem [thread:$0]  %s50, 2048, %s52, [#allocation9], 64, 64, 4
    $region17: #{tpu_custom_call.1} parent=1 // pred_fallthru
      _
    // Predicated region
    $region18: #{tpu_custom_call.1} parent=1 // pred_check
      _
    $region19: #{tpu_custom_call.1} parent=1 // pred_check_branch
      %59 = sbr.rel (0) target = $region21
    $region20: #{tpu_custom_call.1} parent=1 // pred_region
      _
    $region21: #{tpu_custom_call.1} parent=1 // pred_fallthru
      _
    // Predicated region
    $region22: #{tpu_custom_call.1} parent=1 // pred_check
      _
    $region23: #{tpu_custom_call.1} parent=1 // pred_check_branch
      %61 = sbr.rel (0) target = $region25
    $region24: #{tpu_custom_call.1} parent=1 // pred_region
      _
    $region25: #{tpu_custom_call.1} parent=1 // pred_fallthru
      _
    // Predicated region
    $region26: #{tpu_custom_call.1} parent=1 // pred_check
      _
    $region27: #{tpu_custom_call.1} parent=1 // pred_check_branch
      %63 = sbr.rel (0) target = $region29
    $region28: #{tpu_custom_call.1} parent=1 // pred_region
      _
    $region29: #{tpu_custom_call.1} parent=1 // pred_fallthru
      _
    // Predicated region
    $region30: #{tpu_custom_call.1} parent=1 // pred_check
      _
    $region31: #{tpu_custom_call.1} parent=1 // pred_check_branch
      %65 = sbr.rel (0) target = $region33
    $region32: #{tpu_custom_call.1} parent=1 // pred_region
      %67 = vsyncadd [#allocation9], 0
      %s68 = sshll.u32 %s7, 4
      %s69 = int_to_ptr.hbm [resolvable:$true] %s68
      %s70 = sshll.u32 [#allocation10], 4
      %s71 = int_to_ptr.vmem [resolvable:$true] %s70
      %76 = dma.hbm_to_vmem [thread:$0]  %s69, 1024, %s71, [#allocation9], 64, 64, 4
    $region33: #{tpu_custom_call.1} parent=1 // pred_fallthru
      _
    // Predicated region
    $region34: #{tpu_custom_call.1} parent=1 // pred_check
      _
    $region35: #{tpu_custom_call.1} parent=1 // pred_check_branch
      %78 = sbr.rel (0) target = $region37
    $region36: #{tpu_custom_call.1} parent=1 // pred_region
      _
    $region37: #{tpu_custom_call.1} parent=1 // pred_fallthru
      _
    // Predicated region
    $region38: #{tpu_custom_call.1} parent=1 // pred_check
      _
    $region39: #{tpu_custom_call.1} parent=1 // pred_check_branch
      %80 = sbr.rel (0) target = $region41
    $region40: #{tpu_custom_call.1} parent=1 // pred_region
      _
    $region41: #{tpu_custom_call.1} parent=1 // pred_fallthru
      _
    // Predicated region
    $region42: #{tpu_custom_call.1} parent=1 // pred_check
      _
    $region43: #{tpu_custom_call.1} parent=1 // pred_check_branch
      %82 = sbr.rel (0) target = $region45
    $region44: #{tpu_custom_call.1} parent=1 // pred_region
      _
    $region45: #{tpu_custom_call.1} parent=1 // pred_fallthru
      _
    // Predicated region
    $region46: #{tpu_custom_call.1} parent=1 // pred_check
      _
    $region47: #{tpu_custom_call.1} parent=1 // pred_check_branch
      %84 = sbr.rel (0) target = $region49
    $region48: #{tpu_custom_call.1} parent=1 // pred_region
      %86 = dma.done [#allocation6], 16
    $region49: #{tpu_custom_call.1} parent=1 // pred_fallthru
      _
    // Predicated region
    $region50: #{tpu_custom_call.1} parent=1 // pred_check
      _
    $region51: #{tpu_custom_call.1} parent=1 // pred_check_branch
      %88 = sbr.rel (0) target = $region53
    $region52: #{tpu_custom_call.1} parent=1 // pred_region
      %90 = dma.done [#allocation4], 4096
    $region53: #{tpu_custom_call.1} parent=1 // pred_fallthru
      _
    // Predicated region
    $region54: #{tpu_custom_call.1} parent=1 // pred_check
      _
    $region55: #{tpu_custom_call.1} parent=1 // pred_check_branch
      %92 = sbr.rel (0) target = $region57
    $region56: #{tpu_custom_call.1} parent=1 // pred_region
      %94 = dma.done [#allocation9], 2048
    $region57: #{tpu_custom_call.1} parent=1 // pred_fallthru
      _
    // Predicated region
    $region58: #{tpu_custom_call.1} parent=1 // pred_check
      _
    $region59: #{tpu_custom_call.1} parent=1 // pred_check_branch
      %96 = sbr.rel (0) target = $region61
    $region60: #{tpu_custom_call.1} parent=1 // pred_region
      %98 = dma.done [#allocation9], 1024
    $region61: #{tpu_custom_call.1} parent=1 // pred_fallthru
      _
    %99 = sfence
    %s100 = sld [smem:[#allocation2]]
    %s101 = scvt.s32.f32 %s100
    %v102 = vstv %s101
    %v103 = vrcp.pop %v102
    %v104 = vmul.f32 %v102, %v103
    %v105 = vsub.f32 1.0, %v104
    %v106 = vmul.f32 %v103, %v105
    %v107 = vadd.f32 %v103, %v106
    %vm108 = vweird.f32 %v102
    %vm109 = vweird.f32 %v103
    %vm110 = vmor %vm108, %vm109
    %v111 = vsel %vm110, %v103, %v107
    %v112 = vand.u32 2147483647, %v102
    %vm113 = vcmp.eq.f32.partialorder %v112, 8.507059e+37
    %v114 = vand.u32 %v102, 2147483648
    %v115 = vor.u32 1.1754944e-38, %v114
    %v116 = vsel %vm113, %v115, %v111
    %s117 = vtos %v116
    %v118 = vlaneseq
    %v119 = vshrl.u32 %v118, 7
    %v120 = vadd.s32 %v119, 8
    %v121 = vadd.s32 %v119, 16
    %v122 = vadd.s32 %v119, 24
    %v123 = vadd.s32 %v119, 32
    %v124 = vadd.s32 %v119, 40
    %v125 = vadd.s32 %v119, 48
    %v126 = vadd.s32 %v119, 56
    %v127 = vadd.s32 %v119, 64
    %v128 = vadd.s32 %v119, 72
    %v129 = vadd.s32 %v119, 80
    %v130 = vadd.s32 %v119, 88
    %v131 = vadd.s32 %v119, 96
    %v132 = vadd.s32 %v119, 104
    %v133 = vadd.s32 %v119, 112
    %v134 = vadd.s32 %v119, 120
    %v135 = vadd.s32 %v119, 128
    %v136 = vadd.s32 %v119, 136
    %v137 = vadd.s32 %v119, 144
    %v138 = vadd.s32 %v119, 152
    %v139 = vadd.s32 %v119, 160
    %v140 = vadd.s32 %v119, 168
    %v141 = vadd.s32 %v119, 176
    %v142 = vadd.s32 %v119, 184
    %v143 = vadd.s32 %v119, 192
    %v144 = vadd.s32 %v119, 200
    %v145 = vadd.s32 %v119, 208
    %v146 = vadd.s32 %v119, 216
    %v147 = vadd.s32 %v119, 224
    %v148 = vadd.s32 %v119, 232
    %v149 = vadd.s32 %v119, 240
    %v150 = vadd.s32 %v119, 248
    %v151 = vstv %s100
    %vm152 = vcmp.lt.s32.totalorder %v119, %v151
    %vm153 = vcmp.lt.s32.totalorder %v120, %v151
    %vm154 = vcmp.lt.s32.totalorder %v121, %v151
    %vm155 = vcmp.lt.s32.totalorder %v122, %v151
    %vm156 = vcmp.lt.s32.totalorder %v123, %v151
    %vm157 = vcmp.lt.s32.totalorder %v124, %v151
    %vm158 = vcmp.lt.s32.totalorder %v125, %v151
    %vm159 = vcmp.lt.s32.totalorder %v126, %v151
    %vm160 = vcmp.lt.s32.totalorder %v127, %v151
    %vm161 = vcmp.lt.s32.totalorder %v128, %v151
    %vm162 = vcmp.lt.s32.totalorder %v129, %v151
    %vm163 = vcmp.lt.s32.totalorder %v130, %v151
    %vm164 = vcmp.lt.s32.totalorder %v131, %v151
    %vm165 = vcmp.lt.s32.totalorder %v132, %v151
    %vm166 = vcmp.lt.s32.totalorder %v133, %v151
    %vm167 = vcmp.lt.s32.totalorder %v134, %v151
    %vm168 = vcmp.lt.s32.totalorder %v135, %v151
    %vm169 = vcmp.lt.s32.totalorder %v136, %v151
    %vm170 = vcmp.lt.s32.totalorder %v137, %v151
    %vm171 = vcmp.lt.s32.totalorder %v138, %v151
    %vm172 = vcmp.lt.s32.totalorder %v139, %v151
    %vm173 = vcmp.lt.s32.totalorder %v140, %v151
    %vm174 = vcmp.lt.s32.totalorder %v141, %v151
    %vm175 = vcmp.lt.s32.totalorder %v142, %v151
    %vm176 = vcmp.lt.s32.totalorder %v143, %v151
    %vm177 = vcmp.lt.s32.totalorder %v144, %v151
    %vm178 = vcmp.lt.s32.totalorder %v145, %v151
    %vm179 = vcmp.lt.s32.totalorder %v146, %v151
    %vm180 = vcmp.lt.s32.totalorder %v147, %v151
    %vm181 = vcmp.lt.s32.totalorder %v148, %v151
    %vm182 = vcmp.lt.s32.totalorder %v149, %v151
    %vm183 = vcmp.lt.s32.totalorder %v150, %v151
    %v184 = vsel %vm152, 1, 0
    %v185 = vsel %vm153, 1, 0
    %v186 = vsel %vm154, 1, 0
    %v187 = vsel %vm155, 1, 0
    %v188 = vsel %vm156, 1, 0
    %v189 = vsel %vm157, 1, 0
    %v190 = vsel %vm158, 1, 0
    %v191 = vsel %vm159, 1, 0
    %v192 = vsel %vm160, 1, 0
    %v193 = vsel %vm161, 1, 0
    %v194 = vsel %vm162, 1, 0
    %v195 = vsel %vm163, 1, 0
    %v196 = vsel %vm164, 1, 0
    %v197 = vsel %vm165, 1, 0
    %v198 = vsel %vm166, 1, 0
    %v199 = vsel %vm167, 1, 0
    %v200 = vsel %vm168, 1, 0
    %v201 = vsel %vm169, 1, 0
    %v202 = vsel %vm170, 1, 0
    %v203 = vsel %vm171, 1, 0
    %v204 = vsel %vm172, 1, 0
    %v205 = vsel %vm173, 1, 0
    %v206 = vsel %vm174, 1, 0
    %v207 = vsel %vm175, 1, 0
    %v208 = vsel %vm176, 1, 0
    %v209 = vsel %vm177, 1, 0
    %v210 = vsel %vm178, 1, 0
    %v211 = vsel %vm179, 1, 0
    %v212 = vsel %vm180, 1, 0
    %v213 = vsel %vm181, 1, 0
    %v214 = vsel %vm182, 1, 0
    %v215 = vsel %vm183, 1, 0
    %v216 = vcvt.s32.f32 %v184
    %v217 = vcvt.s32.f32 %v185
    %v218 = vcvt.s32.f32 %v186
    %v219 = vcvt.s32.f32 %v187
    %v220 = vcvt.s32.f32 %v188
    %v221 = vcvt.s32.f32 %v189
    %v222 = vcvt.s32.f32 %v190
    %v223 = vcvt.s32.f32 %v191
    %v224 = vcvt.s32.f32 %v192
    %v225 = vcvt.s32.f32 %v193
    %v226 = vcvt.s32.f32 %v194
    %v227 = vcvt.s32.f32 %v195
    %v228 = vcvt.s32.f32 %v196
    %v229 = vcvt.s32.f32 %v197
    %v230 = vcvt.s32.f32 %v198
    %v231 = vcvt.s32.f32 %v199
    %v232 = vcvt.s32.f32 %v200
    %v233 = vcvt.s32.f32 %v201
    %v234 = vcvt.s32.f32 %v202
    %v235 = vcvt.s32.f32 %v203
    %v236 = vcvt.s32.f32 %v204
    %v237 = vcvt.s32.f32 %v205
    %v238 = vcvt.s32.f32 %v206
    %v239 = vcvt.s32.f32 %v207
    %v240 = vcvt.s32.f32 %v208
    %v241 = vcvt.s32.f32 %v209
    %v242 = vcvt.s32.f32 %v210
    %v243 = vcvt.s32.f32 %v211
    %v244 = vcvt.s32.f32 %v212
    %v245 = vcvt.s32.f32 %v213
    %v246 = vcvt.s32.f32 %v214
    %v247 = vcvt.s32.f32 %v215
    %v248 = vld [vmem:[#allocation7] sm:$0xff]
    %v249 = vld [vmem:[#allocation7 + $0x8] sm:$0xff]
    %v250 = vld [vmem:[#allocation7 + $0x10] sm:$0xff]
    %v251 = vld [vmem:[#allocation7 + $0x18] sm:$0xff]
    %v252 = vld [vmem:[#allocation7 + $0x20] sm:$0xff]
    %v253 = vld [vmem:[#allocation7 + $0x28] sm:$0xff]
    %v254 = vld [vmem:[#allocation7 + $0x30] sm:$0xff]
    %v255 = vld [vmem:[#allocation7 + $0x38] sm:$0xff]
    %v256 = vld [vmem:[#allocation7 + $0x40] sm:$0xff]
    %v257 = vld [vmem:[#allocation7 + $0x48] sm:$0xff]
    %v258 = vld [vmem:[#allocation7 + $0x50] sm:$0xff]
    %v259 = vld [vmem:[#allocation7 + $0x58] sm:$0xff]
    %v260 = vld [vmem:[#allocation7 + $0x60] sm:$0xff]
    %v261 = vld [vmem:[#allocation7 + $0x68] sm:$0xff]
    %v262 = vld [vmem:[#allocation7 + $0x70] sm:$0xff]
    %v263 = vld [vmem:[#allocation7 + $0x78] sm:$0xff]
    %v264 = vld [vmem:[#allocation7 + $0x80] sm:$0xff]
    %v265 = vld [vmem:[#allocation7 + $0x88] sm:$0xff]
    %v266 = vld [vmem:[#allocation7 + $0x90] sm:$0xff]
    %v267 = vld [vmem:[#allocation7 + $0x98] sm:$0xff]
    %v268 = vld [vmem:[#allocation7 + $0xa0] sm:$0xff]
    %v269 = vld [vmem:[#allocation7 + $0xa8] sm:$0xff]
    %v270 = vld [vmem:[#allocation7 + $0xb0] sm:$0xff]
    %v271 = vld [vmem:[#allocation7 + $0xb8] sm:$0xff]
    %v272 = vld [vmem:[#allocation7 + $0xc0] sm:$0xff]
    %v273 = vld [vmem:[#allocation7 + $0xc8] sm:$0xff]
    %v274 = vld [vmem:[#allocation7 + $0xd0] sm:$0xff]
    %v275 = vld [vmem:[#allocation7 + $0xd8] sm:$0xff]
    %v276 = vld [vmem:[#allocation7 + $0xe0] sm:$0xff]
    %v277 = vld [vmem:[#allocation7 + $0xe8] sm:$0xff]
    %v278 = vld [vmem:[#allocation7 + $0xf0] sm:$0xff]
    %v279 = vld [vmem:[#allocation7 + $0xf8] sm:$0xff]
    %v280 = vld [vmem:[#allocation8] sm:$0xf]
    %v281 = vld [vmem:[#allocation8 + $0x4] sm:$0xf]
    %v282 = vld [vmem:[#allocation8 + $0x8] sm:$0xf]
    %v283 = vld [vmem:[#allocation8 + $0xc] sm:$0xf]
    %v284 = vld [vmem:[#allocation8 + $0x10] sm:$0xf]
    %v285 = vld [vmem:[#allocation8 + $0x14] sm:$0xf]
    %v286 = vld [vmem:[#allocation8 + $0x18] sm:$0xf]
    %v287 = vld [vmem:[#allocation8 + $0x1c] sm:$0xf]
    %v288 = vld [vmem:[#allocation8 + $0x20] sm:$0xf]
    %v289 = vld [vmem:[#allocation8 + $0x24] sm:$0xf]
    %v290 = vld [vmem:[#allocation8 + $0x28] sm:$0xf]
    %v291 = vld [vmem:[#allocation8 + $0x2c] sm:$0xf]
    %v292 = vld [vmem:[#allocation8 + $0x30] sm:$0xf]
    %v293 = vld [vmem:[#allocation8 + $0x34] sm:$0xf]
    %v294 = vld [vmem:[#allocation8 + $0x38] sm:$0xf]
    %v295 = vld [vmem:[#allocation8 + $0x3c] sm:$0xf]
    %v296 = vld [vmem:[#allocation8 + $0x40] sm:$0xf]
    %v297 = vld [vmem:[#allocation8 + $0x44] sm:$0xf]
    %v298 = vld [vmem:[#allocation8 + $0x48] sm:$0xf]
    %v299 = vld [vmem:[#allocation8 + $0x4c] sm:$0xf]
    %v300 = vld [vmem:[#allocation8 + $0x50] sm:$0xf]
    %v301 = vld [vmem:[#allocation8 + $0x54] sm:$0xf]
    %v302 = vld [vmem:[#allocation8 + $0x58] sm:$0xf]
    %v303 = vld [vmem:[#allocation8 + $0x5c] sm:$0xf]
    %v304 = vld [vmem:[#allocation8 + $0x60] sm:$0xf]
    %v305 = vld [vmem:[#allocation8 + $0x64] sm:$0xf]
    %v306 = vld [vmem:[#allocation8 + $0x68] sm:$0xf]
    %v307 = vld [vmem:[#allocation8 + $0x6c] sm:$0xf]
    %v308 = vld [vmem:[#allocation8 + $0x70] sm:$0xf]
    %v309 = vld [vmem:[#allocation8 + $0x74] sm:$0xf]
    %v310 = vld [vmem:[#allocation8 + $0x78] sm:$0xf]
    %v311 = vld [vmem:[#allocation8 + $0x7c] sm:$0xf]
    %v312 = vld [vmem:[%s4] sm:$0x1]
    %v314 = vperm.slane %v312, 0
    %v348 = vunpack.c.l.b16 %v248
    %v349 = vunpack.c.h.b16 %v248
    %v350 = vunpack.c.l.b16 %v249
    %v351 = vunpack.c.h.b16 %v249
    %v352 = vunpack.c.l.b16 %v250
    %v353 = vunpack.c.h.b16 %v250
    %v354 = vunpack.c.l.b16 %v251
    %v355 = vunpack.c.h.b16 %v251
    %v356 = vunpack.c.l.b16 %v252
    %v357 = vunpack.c.h.b16 %v252
    %v358 = vunpack.c.l.b16 %v253
    %v359 = vunpack.c.h.b16 %v253
    %v360 = vunpack.c.l.b16 %v254
    %v361 = vunpack.c.h.b16 %v254
    %v362 = vunpack.c.l.b16 %v255
    %v363 = vunpack.c.h.b16 %v255
    %v364 = vunpack.c.l.b16 %v256
    %v365 = vunpack.c.h.b16 %v256
    %v366 = vunpack.c.l.b16 %v257
    %v367 = vunpack.c.h.b16 %v257
    %v368 = vunpack.c.l.b16 %v258
    %v369 = vunpack.c.h.b16 %v258
    %v370 = vunpack.c.l.b16 %v259
    %v371 = vunpack.c.h.b16 %v259
    %v372 = vunpack.c.l.b16 %v260
    %v373 = vunpack.c.h.b16 %v260
    %v374 = vunpack.c.l.b16 %v261
    %v375 = vunpack.c.h.b16 %v261
    %v376 = vunpack.c.l.b16 %v262
    %v377 = vunpack.c.h.b16 %v262
    %v378 = vunpack.c.l.b16 %v263
    %v379 = vunpack.c.h.b16 %v263
    %v380 = vunpack.c.l.b16 %v264
    %v381 = vunpack.c.h.b16 %v264
    %v382 = vunpack.c.l.b16 %v265
    %v383 = vunpack.c.h.b16 %v265
    %v384 = vunpack.c.l.b16 %v266
    %v385 = vunpack.c.h.b16 %v266
    %v386 = vunpack.c.l.b16 %v267
    %v387 = vunpack.c.h.b16 %v267
    %v388 = vunpack.c.l.b16 %v268
    %v389 = vunpack.c.h.b16 %v268
    %v390 = vunpack.c.l.b16 %v269
    %v391 = vunpack.c.h.b16 %v269
    %v392 = vunpack.c.l.b16 %v270
    %v393 = vunpack.c.h.b16 %v270
    %v394 = vunpack.c.l.b16 %v271
    %v395 = vunpack.c.h.b16 %v271
    %v396 = vunpack.c.l.b16 %v272
    %v397 = vunpack.c.h.b16 %v272
    %v398 = vunpack.c.l.b16 %v273
    %v399 = vunpack.c.h.b16 %v273
    %v400 = vunpack.c.l.b16 %v274
    %v401 = vunpack.c.h.b16 %v274
    %v402 = vunpack.c.l.b16 %v275
    %v403 = vunpack.c.h.b16 %v275
    %v404 = vunpack.c.l.b16 %v276
    %v405 = vunpack.c.h.b16 %v276
    %v406 = vunpack.c.l.b16 %v277
    %v407 = vunpack.c.h.b16 %v277
    %v408 = vunpack.c.l.b16 %v278
    %v409 = vunpack.c.h.b16 %v278
    %v410 = vunpack.c.l.b16 %v279
    %v411 = vunpack.c.h.b16 %v279
    %v412 = vpack.c.b16 %v350, %v348
    %v413 = vpack.c.b16 %v351, %v349
    %v414 = vpack.c.b16 %v354, %v352
    %v415 = vpack.c.b16 %v355, %v353
    %v416 = vpack.c.b16 %v358, %v356
    %v417 = vpack.c.b16 %v359, %v357
    %v418 = vpack.c.b16 %v362, %v360
    %v419 = vpack.c.b16 %v363, %v361
    %v420 = vpack.c.b16 %v366, %v364
    %v421 = vpack.c.b16 %v367, %v365
    %v422 = vpack.c.b16 %v370, %v368
    %v423 = vpack.c.b16 %v371, %v369
    %v424 = vpack.c.b16 %v374, %v372
    %v425 = vpack.c.b16 %v375, %v373
    %v426 = vpack.c.b16 %v378, %v376
    %v427 = vpack.c.b16 %v379, %v377
    %v428 = vpack.c.b16 %v382, %v380
    %v429 = vpack.c.b16 %v383, %v381
    %v430 = vpack.c.b16 %v386, %v384
    %v431 = vpack.c.b16 %v387, %v385
    %v432 = vpack.c.b16 %v390, %v388
    %v433 = vpack.c.b16 %v391, %v389
    %v434 = vpack.c.b16 %v394, %v392
    %v435 = vpack.c.b16 %v395, %v393
    %v436 = vpack.c.b16 %v398, %v396
    %v437 = vpack.c.b16 %v399, %v397
    %v438 = vpack.c.b16 %v402, %v400
    %v439 = vpack.c.b16 %v403, %v401
    %v440 = vpack.c.b16 %v406, %v404
    %v441 = vpack.c.b16 %v407, %v405
    %v442 = vpack.c.b16 %v410, %v408
    %v443 = vpack.c.b16 %v411, %v409
    %v508 = vunpack.c.l.b16 %v280
    %v509 = vunpack.c.l.b16 %v281
    %v510 = vunpack.c.l.b16 %v282
    %v511 = vunpack.c.l.b16 %v283
    %v512 = vunpack.c.l.b16 %v284
    %v513 = vunpack.c.l.b16 %v285
    %v514 = vunpack.c.l.b16 %v286
    %v515 = vunpack.c.l.b16 %v287
    %v516 = vunpack.c.l.b16 %v288
    %v517 = vunpack.c.l.b16 %v289
    %v518 = vunpack.c.l.b16 %v290
    %v519 = vunpack.c.l.b16 %v291
    %v520 = vunpack.c.l.b16 %v292
    %v521 = vunpack.c.l.b16 %v293
    %v522 = vunpack.c.l.b16 %v294
    %v523 = vunpack.c.l.b16 %v295
    %v524 = vunpack.c.l.b16 %v296
    %v525 = vunpack.c.l.b16 %v297
    %v526 = vunpack.c.l.b16 %v298
    %v527 = vunpack.c.l.b16 %v299
    %v528 = vunpack.c.l.b16 %v300
    %v529 = vunpack.c.l.b16 %v301
    %v530 = vunpack.c.l.b16 %v302
    %v531 = vunpack.c.l.b16 %v303
    %v532 = vunpack.c.l.b16 %v304
    %v533 = vunpack.c.l.b16 %v305
    %v534 = vunpack.c.l.b16 %v306
    %v535 = vunpack.c.l.b16 %v307
    %v536 = vunpack.c.l.b16 %v308
    %v537 = vunpack.c.l.b16 %v309
    %v538 = vunpack.c.l.b16 %v310
    %v539 = vunpack.c.l.b16 %v311
    %v540 = vpack.c.b16 %v509, %v508
    %v541 = vpack.c.b16 %v511, %v510
    %v542 = vpack.c.b16 %v513, %v512
    %v543 = vpack.c.b16 %v515, %v514
    %v544 = vpack.c.b16 %v517, %v516
    %v545 = vpack.c.b16 %v519, %v518
    %v546 = vpack.c.b16 %v521, %v520
    %v547 = vpack.c.b16 %v523, %v522
    %v548 = vpack.c.b16 %v525, %v524
    %v549 = vpack.c.b16 %v527, %v526
    %v550 = vpack.c.b16 %v529, %v528
    %v551 = vpack.c.b16 %v531, %v530
    %v552 = vpack.c.b16 %v533, %v532
    %v553 = vpack.c.b16 %v535, %v534
    %v554 = vpack.c.b16 %v537, %v536
    %v555 = vpack.c.b16 %v539, %v538
    %572 = vmatpush.bf16.msra.mxu0 %v547
    %573 = vmatpush.bf16.msra.mxu0 %v546
    %574 = vmatpush.bf16.msra.mxu0 %v545
    %575 = vmatpush.bf16.msra.mxu0 %v544
    %576 = vmatpush.bf16.msra.mxu0 %v543
    %577 = vmatpush.bf16.msra.mxu0 %v542
    %578 = vmatpush.bf16.msra.mxu0 %v541
    %579 = vmatpush.bf16.msra.mxu0 %v540
    %580 = vmatmul.bf16.gmra.mxu0 %v412
    %v581 = vpop.f32.mrf.mxu0
    %v582 = vadd.f32 %v314, %v581
    %v583 = vpop.f32.mrf.mxu0
    %v584 = vadd.f32 %v314, %v583
    %585 = vmatmul.bf16.gmra.mxu0 %v414
    %v586 = vpop.f32.mrf.mxu0
    %v587 = vadd.f32 %v314, %v586
    %v588 = vpop.f32.mrf.mxu0
    %v589 = vadd.f32 %v314, %v588
    %590 = vmatmul.bf16.gmra.mxu0 %v416
    %v591 = vpop.f32.mrf.mxu0
    %v592 = vadd.f32 %v314, %v591
    %v593 = vpop.f32.mrf.mxu0
    %v594 = vadd.f32 %v314, %v593
    %595 = vmatmul.bf16.gmra.mxu0 %v418
    %v596 = vpop.f32.mrf.mxu0
    %v597 = vadd.f32 %v314, %v596
    %v598 = vpop.f32.mrf.mxu0
    %v599 = vadd.f32 %v314, %v598
    %600 = vmatmul.bf16.gmra.mxu0 %v420
    %v601 = vpop.f32.mrf.mxu0
    %v602 = vadd.f32 %v314, %v601
    %v603 = vpop.f32.mrf.mxu0
    %v604 = vadd.f32 %v314, %v603
    %605 = vmatmul.bf16.gmra.mxu0 %v422
    %v606 = vpop.f32.mrf.mxu0
    %v607 = vadd.f32 %v314, %v606
    %v608 = vpop.f32.mrf.mxu0
    %v609 = vadd.f32 %v314, %v608
    %610 = vmatmul.bf16.gmra.mxu0 %v424
    %v611 = vpop.f32.mrf.mxu0
    %v612 = vadd.f32 %v314, %v611
    %v613 = vpop.f32.mrf.mxu0
    %v614 = vadd.f32 %v314, %v613
    %615 = vmatmul.bf16.gmra.mxu0 %v426
    %v616 = vpop.f32.mrf.mxu0
    %v617 = vadd.f32 %v314, %v616
    %v618 = vpop.f32.mrf.mxu0
    %v619 = vadd.f32 %v314, %v618
    %620 = vmatmul.bf16.gmra.mxu0 %v428
    %v621 = vpop.f32.mrf.mxu0
    %v622 = vadd.f32 %v314, %v621
    %v623 = vpop.f32.mrf.mxu0
    %v624 = vadd.f32 %v314, %v623
    %625 = vmatmul.bf16.gmra.mxu0 %v430
    %v626 = vpop.f32.mrf.mxu0
    %v627 = vadd.f32 %v314, %v626
    %v628 = vpop.f32.mrf.mxu0
    %v629 = vadd.f32 %v314, %v628
    %630 = vmatmul.bf16.gmra.mxu0 %v432
    %v631 = vpop.f32.mrf.mxu0
    %v632 = vadd.f32 %v314, %v631
    %v633 = vpop.f32.mrf.mxu0
    %v634 = vadd.f32 %v314, %v633
    %635 = vmatmul.bf16.gmra.mxu0 %v434
    %v636 = vpop.f32.mrf.mxu0
    %v637 = vadd.f32 %v314, %v636
    %v638 = vpop.f32.mrf.mxu0
    %v639 = vadd.f32 %v314, %v638
    %640 = vmatmul.bf16.gmra.mxu0 %v436
    %v641 = vpop.f32.mrf.mxu0
    %v642 = vadd.f32 %v314, %v641
    %v643 = vpop.f32.mrf.mxu0
    %v644 = vadd.f32 %v314, %v643
    %645 = vmatmul.bf16.gmra.mxu0 %v438
    %v646 = vpop.f32.mrf.mxu0
    %v647 = vadd.f32 %v314, %v646
    %v648 = vpop.f32.mrf.mxu0
    %v649 = vadd.f32 %v314, %v648
    %650 = vmatmul.bf16.gmra.mxu0 %v440
    %v651 = vpop.f32.mrf.mxu0
    %v652 = vadd.f32 %v314, %v651
    %v653 = vpop.f32.mrf.mxu0
    %v654 = vadd.f32 %v314, %v653
    %655 = vmatmul.bf16.gmra.mxu0 %v442
    %v656 = vpop.f32.mrf.mxu0
    %v657 = vadd.f32 %v314, %v656
    %v658 = vpop.f32.mrf.mxu0
    %v659 = vadd.f32 %v314, %v658
    %660 = vdwg.mxu0
    %661 = vmatpush.bf16.msra.mxu0 %v555
    %662 = vmatpush.bf16.msra.mxu0 %v554
    %663 = vmatpush.bf16.msra.mxu0 %v553
    %664 = vmatpush.bf16.msra.mxu0 %v552
    %665 = vmatpush.bf16.msra.mxu0 %v551
    %666 = vmatpush.bf16.msra.mxu0 %v550
    %667 = vmatpush.bf16.msra.mxu0 %v549
    %668 = vmatpush.bf16.msra.mxu0 %v548
    %669 = vmatmul.bf16.gmra.mxu0 %v413
    %v670 = vpop.f32.mrf.mxu0
    %v671 = vadd.f32 %v582, %v670
    %v672 = vpop.f32.mrf.mxu0
    %v673 = vadd.f32 %v584, %v672
    %674 = vmatmul.bf16.gmra.mxu0 %v415
    %v675 = vpop.f32.mrf.mxu0
    %v676 = vadd.f32 %v587, %v675
    %v677 = vpop.f32.mrf.mxu0
    %v678 = vadd.f32 %v589, %v677
    %679 = vmatmul.bf16.gmra.mxu0 %v417
    %v680 = vpop.f32.mrf.mxu0
    %v681 = vadd.f32 %v592, %v680
    %v682 = vpop.f32.mrf.mxu0
    %v683 = vadd.f32 %v594, %v682
    %684 = vmatmul.bf16.gmra.mxu0 %v419
    %v685 = vpop.f32.mrf.mxu0
    %v686 = vadd.f32 %v597, %v685
    %v687 = vpop.f32.mrf.mxu0
    %v688 = vadd.f32 %v599, %v687
    %689 = vmatmul.bf16.gmra.mxu0 %v421
    %v690 = vpop.f32.mrf.mxu0
    %v691 = vadd.f32 %v602, %v690
    %v692 = vpop.f32.mrf.mxu0
    %v693 = vadd.f32 %v604, %v692
    %694 = vmatmul.bf16.gmra.mxu0 %v423
    %v695 = vpop.f32.mrf.mxu0
    %v696 = vadd.f32 %v607, %v695
    %v697 = vpop.f32.mrf.mxu0
    %v698 = vadd.f32 %v609, %v697
    %699 = vmatmul.bf16.gmra.mxu0 %v425
    %v700 = vpop.f32.mrf.mxu0
    %v701 = vadd.f32 %v612, %v700
    %v702 = vpop.f32.mrf.mxu0
    %v703 = vadd.f32 %v614, %v702
    %704 = vmatmul.bf16.gmra.mxu0 %v427
    %v705 = vpop.f32.mrf.mxu0
    %v706 = vadd.f32 %v617, %v705
    %v707 = vpop.f32.mrf.mxu0
    %v708 = vadd.f32 %v619, %v707
    %709 = vmatmul.bf16.gmra.mxu0 %v429
    %v710 = vpop.f32.mrf.mxu0
    %v711 = vadd.f32 %v622, %v710
    %v712 = vpop.f32.mrf.mxu0
    %v713 = vadd.f32 %v624, %v712
    %714 = vmatmul.bf16.gmra.mxu0 %v431
    %v715 = vpop.f32.mrf.mxu0
    %v716 = vadd.f32 %v627, %v715
    %v717 = vpop.f32.mrf.mxu0
    %v718 = vadd.f32 %v629, %v717
    %719 = vmatmul.bf16.gmra.mxu0 %v433
    %v720 = vpop.f32.mrf.mxu0
    %v721 = vadd.f32 %v632, %v720
    %v722 = vpop.f32.mrf.mxu0
    %v723 = vadd.f32 %v634, %v722
    %724 = vmatmul.bf16.gmra.mxu0 %v435
    %v725 = vpop.f32.mrf.mxu0
    %v726 = vadd.f32 %v637, %v725
    %v727 = vpop.f32.mrf.mxu0
    %v728 = vadd.f32 %v639, %v727
    %729 = vmatmul.bf16.gmra.mxu0 %v437
    %v730 = vpop.f32.mrf.mxu0
    %v731 = vadd.f32 %v642, %v730
    %v732 = vpop.f32.mrf.mxu0
    %v733 = vadd.f32 %v644, %v732
    %734 = vmatmul.bf16.gmra.mxu0 %v439
    %v735 = vpop.f32.mrf.mxu0
    %v736 = vadd.f32 %v647, %v735
    %v737 = vpop.f32.mrf.mxu0
    %v738 = vadd.f32 %v649, %v737
    %739 = vmatmul.bf16.gmra.mxu0 %v441
    %v740 = vpop.f32.mrf.mxu0
    %v741 = vadd.f32 %v652, %v740
    %v742 = vpop.f32.mrf.mxu0
    %v743 = vadd.f32 %v654, %v742
    %744 = vmatmul.bf16.gmra.mxu0 %v443
    %v745 = vpop.f32.mrf.mxu0
    %v746 = vadd.f32 %v657, %v745
    %v747 = vpop.f32.mrf.mxu0
    %v748 = vadd.f32 %v659, %v747
    %749 = vdwg.mxu0
    %v750 = vmul.f32 %v671, %v216
    %v751 = vmul.f32 %v673, %v217
    %v752 = vmul.f32 %v676, %v218
    %v753 = vmul.f32 %v678, %v219
    %v754 = vmul.f32 %v681, %v220
    %v755 = vmul.f32 %v683, %v221
    %v756 = vmul.f32 %v686, %v222
    %v757 = vmul.f32 %v688, %v223
    %v758 = vmul.f32 %v691, %v224
    %v759 = vmul.f32 %v693, %v225
    %v760 = vmul.f32 %v696, %v226
    %v761 = vmul.f32 %v698, %v227
    %v762 = vmul.f32 %v701, %v228
    %v763 = vmul.f32 %v703, %v229
    %v764 = vmul.f32 %v706, %v230
    %v765 = vmul.f32 %v708, %v231
    %v766 = vmul.f32 %v711, %v232
    %v767 = vmul.f32 %v713, %v233
    %v768 = vmul.f32 %v716, %v234
    %v769 = vmul.f32 %v718, %v235
    %v770 = vmul.f32 %v721, %v236
    %v771 = vmul.f32 %v723, %v237
    %v772 = vmul.f32 %v726, %v238
    %v773 = vmul.f32 %v728, %v239
    %v774 = vmul.f32 %v731, %v240
    %v775 = vmul.f32 %v733, %v241
    %v776 = vmul.f32 %v736, %v242
    %v777 = vmul.f32 %v738, %v243
    %v778 = vmul.f32 %v741, %v244
    %v779 = vmul.f32 %v743, %v245
    %v780 = vmul.f32 %v746, %v246
    %v781 = vmul.f32 %v748, %v247
    %v782 = vadd.f32 %v750, %v751
    %v783 = vadd.f32 %v782, %v752
    %v784 = vadd.f32 %v783, %v753
    %v785 = vadd.f32 %v784, %v754
    %v786 = vadd.f32 %v785, %v755
    %v787 = vadd.f32 %v786, %v756
    %v788 = vadd.f32 %v787, %v757
    %v789 = vadd.f32 %v788, %v758
    %v790 = vadd.f32 %v789, %v759
    %v791 = vadd.f32 %v790, %v760
    %v792 = vadd.f32 %v791, %v761
    %v793 = vadd.f32 %v792, %v762
    %v794 = vadd.f32 %v793, %v763
    %v795 = vadd.f32 %v794, %v764
    %v796 = vadd.f32 %v795, %v765
    %v797 = vadd.f32 %v796, %v766
    %v798 = vadd.f32 %v797, %v767
    %v799 = vadd.f32 %v798, %v768
    %v800 = vadd.f32 %v799, %v769
    %v801 = vadd.f32 %v800, %v770
    %v802 = vadd.f32 %v801, %v771
    %v803 = vadd.f32 %v802, %v772
    %v804 = vadd.f32 %v803, %v773
    %v805 = vadd.f32 %v804, %v774
    %v806 = vadd.f32 %v805, %v775
    %v807 = vadd.f32 %v806, %v776
    %v808 = vadd.f32 %v807, %v777
    %v809 = vadd.f32 %v808, %v778
    %v810 = vadd.f32 %v809, %v779
    %v811 = vadd.f32 %v810, %v780
    %v812 = vadd.f32 %v811, %v781
    %v813 = vrot.slane %v812, 4
    %v814 = vadd.f32 %v812, %v813
    %v815 = vrot.slane %v814, 2
    %v816 = vadd.f32 %v814, %v815
    %v817 = vrot.slane %v816, 1
    %v818 = vadd.f32 %v816, %v817
    %v819 = vstv %s117
    %v820 = vmul.f32 %v818, %v819
    %v821 = vsub.f32 %v671, %v820
    %v822 = vsub.f32 %v673, %v820
    %v823 = vsub.f32 %v676, %v820
    %v824 = vsub.f32 %v678, %v820
    %v825 = vsub.f32 %v681, %v820
    %v826 = vsub.f32 %v683, %v820
    %v827 = vsub.f32 %v686, %v820
    %v828 = vsub.f32 %v688, %v820
    %v829 = vsub.f32 %v691, %v820
    %v830 = vsub.f32 %v693, %v820
    %v831 = vsub.f32 %v696, %v820
    %v832 = vsub.f32 %v698, %v820
    %v833 = vsub.f32 %v701, %v820
    %v834 = vsub.f32 %v703, %v820
    %v835 = vsub.f32 %v706, %v820
    %v836 = vsub.f32 %v708, %v820
    %v837 = vsub.f32 %v711, %v820
    %v838 = vsub.f32 %v713, %v820
    %v839 = vsub.f32 %v716, %v820
    %v840 = vsub.f32 %v718, %v820
    %v841 = vsub.f32 %v721, %v820
    %v842 = vsub.f32 %v723, %v820
    %v843 = vsub.f32 %v726, %v820
    %v844 = vsub.f32 %v728, %v820
    %v845 = vsub.f32 %v731, %v820
    %v846 = vsub.f32 %v733, %v820
    %v847 = vsub.f32 %v736, %v820
    %v848 = vsub.f32 %v738, %v820
    %v849 = vsub.f32 %v741, %v820
    %v850 = vsub.f32 %v743, %v820
    %v851 = vsub.f32 %v746, %v820
    %v852 = vsub.f32 %v748, %v820
    %v853 = vmul.f32 %v821, %v216
    %v854 = vmul.f32 %v822, %v217
    %v855 = vmul.f32 %v823, %v218
    %v856 = vmul.f32 %v824, %v219
    %v857 = vmul.f32 %v825, %v220
    %v858 = vmul.f32 %v826, %v221
    %v859 = vmul.f32 %v827, %v222
    %v860 = vmul.f32 %v828, %v223
    %v861 = vmul.f32 %v829, %v224
    %v862 = vmul.f32 %v830, %v225
    %v863 = vmul.f32 %v831, %v226
    %v864 = vmul.f32 %v832, %v227
    %v865 = vmul.f32 %v833, %v228
    %v866 = vmul.f32 %v834, %v229
    %v867 = vmul.f32 %v835, %v230
    %v868 = vmul.f32 %v836, %v231
    %v869 = vmul.f32 %v837, %v232
    %v870 = vmul.f32 %v838, %v233
    %v871 = vmul.f32 %v839, %v234
    %v872 = vmul.f32 %v840, %v235
    %v873 = vmul.f32 %v841, %v236
    %v874 = vmul.f32 %v842, %v237
    %v875 = vmul.f32 %v843, %v238
    %v876 = vmul.f32 %v844, %v239
    %v877 = vmul.f32 %v845, %v240
    %v878 = vmul.f32 %v846, %v241
    %v879 = vmul.f32 %v847, %v242
    %v880 = vmul.f32 %v848, %v243
    %v881 = vmul.f32 %v849, %v244
    %v882 = vmul.f32 %v850, %v245
    %v883 = vmul.f32 %v851, %v246
    %v884 = vmul.f32 %v852, %v247
    %v885 = vmul.f32 %v853, %v853
    %v886 = vmul.f32 %v854, %v854
    %v887 = vmul.f32 %v855, %v855
    %v888 = vmul.f32 %v856, %v856
    %v889 = vmul.f32 %v857, %v857
    %v890 = vmul.f32 %v858, %v858
    %v891 = vmul.f32 %v859, %v859
    %v892 = vmul.f32 %v860, %v860
    %v893 = vmul.f32 %v861, %v861
    %v894 = vmul.f32 %v862, %v862
    %v895 = vmul.f32 %v863, %v863
    %v896 = vmul.f32 %v864, %v864
    %v897 = vmul.f32 %v865, %v865
    %v898 = vmul.f32 %v866, %v866
    %v899 = vmul.f32 %v867, %v867
    %v900 = vmul.f32 %v868, %v868
    %v901 = vmul.f32 %v869, %v869
    %v902 = vmul.f32 %v870, %v870
    %v903 = vmul.f32 %v871, %v871
    %v904 = vmul.f32 %v872, %v872
    %v905 = vmul.f32 %v873, %v873
    %v906 = vmul.f32 %v874, %v874
    %v907 = vmul.f32 %v875, %v875
    %v908 = vmul.f32 %v876, %v876
    %v909 = vmul.f32 %v877, %v877
    %v910 = vmul.f32 %v878, %v878
    %v911 = vmul.f32 %v879, %v879
    %v912 = vmul.f32 %v880, %v880
    %v913 = vmul.f32 %v881, %v881
    %v914 = vmul.f32 %v882, %v882
    %v915 = vmul.f32 %v883, %v883
    %v916 = vmul.f32 %v884, %v884
    %v917 = vadd.f32 %v885, %v886
    %v918 = vadd.f32 %v917, %v887
    %v919 = vadd.f32 %v918, %v888
    %v920 = vadd.f32 %v919, %v889
    %v921 = vadd.f32 %v920, %v890
    %v922 = vadd.f32 %v921, %v891
    %v923 = vadd.f32 %v922, %v892
    %v924 = vadd.f32 %v923, %v893
    %v925 = vadd.f32 %v924, %v894
    %v926 = vadd.f32 %v925, %v895
    %v927 = vadd.f32 %v926, %v896
    %v928 = vadd.f32 %v927, %v897
    %v929 = vadd.f32 %v928, %v898
    %v930 = vadd.f32 %v929, %v899
    %v931 = vadd.f32 %v930, %v900
    %v932 = vadd.f32 %v931, %v901
    %v933 = vadd.f32 %v932, %v902
    %v934 = vadd.f32 %v933, %v903
    %v935 = vadd.f32 %v934, %v904
    %v936 = vadd.f32 %v935, %v905
    %v937 = vadd.f32 %v936, %v906
    %v938 = vadd.f32 %v937, %v907
    %v939 = vadd.f32 %v938, %v908
    %v940 = vadd.f32 %v939, %v909
    %v941 = vadd.f32 %v940, %v910
    %v942 = vadd.f32 %v941, %v911
    %v943 = vadd.f32 %v942, %v912
    %v944 = vadd.f32 %v943, %v913
    %v945 = vadd.f32 %v944, %v914
    %v946 = vadd.f32 %v945, %v915
    %v947 = vadd.f32 %v946, %v916
    %v948 = vrot.slane %v947, 4
    %v949 = vadd.f32 %v947, %v948
    %v950 = vrot.slane %v949, 2
    %v951 = vadd.f32 %v949, %v950
    %v952 = vrot.slane %v951, 1
    %v953 = vadd.f32 %v951, %v952
    %v954 = vmul.f32 %v953, %v819
    %v955 = vld [vmem:[%s5] sm:$0x1]
    %v956 = vadd.f32 %v954, 1e-05
    %v957 = vrsqrt.pop %v956
    %v958 = vmul.f32 %v957, %v956
    %v959 = vmul.f32 %v958, %v957
    %v960 = vmul.f32 0.5, %v959
    %v961 = vsub.f32 1.5, %v960
    %v962 = vmul.f32 %v957, %v961
    %vm963 = vweird.f32 %v956
    %vm964 = vweird.f32 %v957
    %vm965 = vmor %vm963, %vm964
    %v966 = vsel %vm965, %v957, %v962
    %v967 = vmul.f32 %v955, %v966
    %v968 = vld [vmem:[%s6] sm:$0x1]
    %v969 = vmul.f32 %v820, %v967
    %v970 = vsub.f32 %v968, %v969
    %v972 = vperm.slane %v967, 0
    %v974 = vmul.f32 %v671, %v972
    %v975 = vmul.f32 %v673, %v972
    %v976 = vmul.f32 %v676, %v972
    %v977 = vmul.f32 %v678, %v972
    %v978 = vmul.f32 %v681, %v972
    %v979 = vmul.f32 %v683, %v972
    %v980 = vmul.f32 %v686, %v972
    %v981 = vmul.f32 %v688, %v972
    %v982 = vmul.f32 %v691, %v972
    %v983 = vmul.f32 %v693, %v972
    %v984 = vmul.f32 %v696, %v972
    %v985 = vmul.f32 %v698, %v972
    %v986 = vmul.f32 %v701, %v972
    %v987 = vmul.f32 %v703, %v972
    %v988 = vmul.f32 %v706, %v972
    %v989 = vmul.f32 %v708, %v972
    %v990 = vmul.f32 %v711, %v972
    %v991 = vmul.f32 %v713, %v972
    %v992 = vmul.f32 %v716, %v972
    %v993 = vmul.f32 %v718, %v972
    %v994 = vmul.f32 %v721, %v972
    %v995 = vmul.f32 %v723, %v972
    %v996 = vmul.f32 %v726, %v972
    %v997 = vmul.f32 %v728, %v972
    %v998 = vmul.f32 %v731, %v972
    %v999 = vmul.f32 %v733, %v972
    %v1000 = vmul.f32 %v736, %v972
    %v1001 = vmul.f32 %v738, %v972
    %v1002 = vmul.f32 %v741, %v972
    %v1003 = vmul.f32 %v743, %v972
    %v1004 = vmul.f32 %v746, %v972
    %v1005 = vmul.f32 %v748, %v972
    %v1007 = vperm.slane %v970, 0
    %v1009 = vadd.f32 %v974, %v1007
    %v1010 = vadd.f32 %v975, %v1007
    %v1011 = vadd.f32 %v976, %v1007
    %v1012 = vadd.f32 %v977, %v1007
    %v1013 = vadd.f32 %v978, %v1007
    %v1014 = vadd.f32 %v979, %v1007
    %v1015 = vadd.f32 %v980, %v1007
    %v1016 = vadd.f32 %v981, %v1007
    %v1017 = vadd.f32 %v982, %v1007
    %v1018 = vadd.f32 %v983, %v1007
    %v1019 = vadd.f32 %v984, %v1007
    %v1020 = vadd.f32 %v985, %v1007
    %v1021 = vadd.f32 %v986, %v1007
    %v1022 = vadd.f32 %v987, %v1007
    %v1023 = vadd.f32 %v988, %v1007
    %v1024 = vadd.f32 %v989, %v1007
    %v1025 = vadd.f32 %v990, %v1007
    %v1026 = vadd.f32 %v991, %v1007
    %v1027 = vadd.f32 %v992, %v1007
    %v1028 = vadd.f32 %v993, %v1007
    %v1029 = vadd.f32 %v994, %v1007
    %v1030 = vadd.f32 %v995, %v1007
    %v1031 = vadd.f32 %v996, %v1007
    %v1032 = vadd.f32 %v997, %v1007
    %v1033 = vadd.f32 %v998, %v1007
    %v1034 = vadd.f32 %v999, %v1007
    %v1035 = vadd.f32 %v1000, %v1007
    %v1036 = vadd.f32 %v1001, %v1007
    %v1037 = vadd.f32 %v1002, %v1007
    %v1038 = vadd.f32 %v1003, %v1007
    %v1039 = vadd.f32 %v1004, %v1007
    %v1040 = vadd.f32 %v1005, %v1007
    %s1041 = sld [smem:[#allocation3]]
    %vm1042 = vcmp.ge.f32.partialorder %v1009, 0.0
    %vm1043 = vcmp.ge.f32.partialorder %v1010, 0.0
    %vm1044 = vcmp.ge.f32.partialorder %v1011, 0.0
    %vm1045 = vcmp.ge.f32.partialorder %v1012, 0.0
    %vm1046 = vcmp.ge.f32.partialorder %v1013, 0.0
    %vm1047 = vcmp.ge.f32.partialorder %v1014, 0.0
    %vm1048 = vcmp.ge.f32.partialorder %v1015, 0.0
    %vm1049 = vcmp.ge.f32.partialorder %v1016, 0.0
    %vm1050 = vcmp.ge.f32.partialorder %v1017, 0.0
    %vm1051 = vcmp.ge.f32.partialorder %v1018, 0.0
    %vm1052 = vcmp.ge.f32.partialorder %v1019, 0.0
    %vm1053 = vcmp.ge.f32.partialorder %v1020, 0.0
    %vm1054 = vcmp.ge.f32.partialorder %v1021, 0.0
    %vm1055 = vcmp.ge.f32.partialorder %v1022, 0.0
    %vm1056 = vcmp.ge.f32.partialorder %v1023, 0.0
    %vm1057 = vcmp.ge.f32.partialorder %v1024, 0.0
    %vm1058 = vcmp.ge.f32.partialorder %v1025, 0.0
    %vm1059 = vcmp.ge.f32.partialorder %v1026, 0.0
    %vm1060 = vcmp.ge.f32.partialorder %v1027, 0.0
    %vm1061 = vcmp.ge.f32.partialorder %v1028, 0.0
    %vm1062 = vcmp.ge.f32.partialorder %v1029, 0.0
    %vm1063 = vcmp.ge.f32.partialorder %v1030, 0.0
    %vm1064 = vcmp.ge.f32.partialorder %v1031, 0.0
    %vm1065 = vcmp.ge.f32.partialorder %v1032, 0.0
    %vm1066 = vcmp.ge.f32.partialorder %v1033, 0.0
    %vm1067 = vcmp.ge.f32.partialorder %v1034, 0.0
    %vm1068 = vcmp.ge.f32.partialorder %v1035, 0.0
    %vm1069 = vcmp.ge.f32.partialorder %v1036, 0.0
    %vm1070 = vcmp.ge.f32.partialorder %v1037, 0.0
    %vm1071 = vcmp.ge.f32.partialorder %v1038, 0.0
    %vm1072 = vcmp.ge.f32.partialorder %v1039, 0.0
    %vm1073 = vcmp.ge.f32.partialorder %v1040, 0.0
    %v1074 = vstv %s1041
    %v1075 = vmul.f32 %v1074, %v1009
    %v1076 = vmul.f32 %v1074, %v1010
    %v1077 = vmul.f32 %v1074, %v1011
    %v1078 = vmul.f32 %v1074, %v1012
    %v1079 = vmul.f32 %v1074, %v1013
    %v1080 = vmul.f32 %v1074, %v1014
    %v1081 = vmul.f32 %v1074, %v1015
    %v1082 = vmul.f32 %v1074, %v1016
    %v1083 = vmul.f32 %v1074, %v1017
    %v1084 = vmul.f32 %v1074, %v1018
    %v1085 = vmul.f32 %v1074, %v1019
    %v1086 = vmul.f32 %v1074, %v1020
    %v1087 = vmul.f32 %v1074, %v1021
    %v1088 = vmul.f32 %v1074, %v1022
    %v1089 = vmul.f32 %v1074, %v1023
    %v1090 = vmul.f32 %v1074, %v1024
    %v1091 = vmul.f32 %v1074, %v1025
    %v1092 = vmul.f32 %v1074, %v1026
    %v1093 = vmul.f32 %v1074, %v1027
    %v1094 = vmul.f32 %v1074, %v1028
    %v1095 = vmul.f32 %v1074, %v1029
    %v1096 = vmul.f32 %v1074, %v1030
    %v1097 = vmul.f32 %v1074, %v1031
    %v1098 = vmul.f32 %v1074, %v1032
    %v1099 = vmul.f32 %v1074, %v1033
    %v1100 = vmul.f32 %v1074, %v1034
    %v1101 = vmul.f32 %v1074, %v1035
    %v1102 = vmul.f32 %v1074, %v1036
    %v1103 = vmul.f32 %v1074, %v1037
    %v1104 = vmul.f32 %v1074, %v1038
    %v1105 = vmul.f32 %v1074, %v1039
    %v1106 = vmul.f32 %v1074, %v1040
    %v1107 = vsel %vm1042, %v1009, %v1075
    %v1108 = vsel %vm1043, %v1010, %v1076
    %v1109 = vsel %vm1044, %v1011, %v1077
    %v1110 = vsel %vm1045, %v1012, %v1078
    %v1111 = vsel %vm1046, %v1013, %v1079
    %v1112 = vsel %vm1047, %v1014, %v1080
    %v1113 = vsel %vm1048, %v1015, %v1081
    %v1114 = vsel %vm1049, %v1016, %v1082
    %v1115 = vsel %vm1050, %v1017, %v1083
    %v1116 = vsel %vm1051, %v1018, %v1084
    %v1117 = vsel %vm1052, %v1019, %v1085
    %v1118 = vsel %vm1053, %v1020, %v1086
    %v1119 = vsel %vm1054, %v1021, %v1087
    %v1120 = vsel %vm1055, %v1022, %v1088
    %v1121 = vsel %vm1056, %v1023, %v1089
    %v1122 = vsel %vm1057, %v1024, %v1090
    %v1123 = vsel %vm1058, %v1025, %v1091
    %v1124 = vsel %vm1059, %v1026, %v1092
    %v1125 = vsel %vm1060, %v1027, %v1093
    %v1126 = vsel %vm1061, %v1028, %v1094
    %v1127 = vsel %vm1062, %v1029, %v1095
    %v1128 = vsel %vm1063, %v1030, %v1096
    %v1129 = vsel %vm1064, %v1031, %v1097
    %v1130 = vsel %vm1065, %v1032, %v1098
    %v1131 = vsel %vm1066, %v1033, %v1099
    %v1132 = vsel %vm1067, %v1034, %v1100
    %v1133 = vsel %vm1068, %v1035, %v1101
    %v1134 = vsel %vm1069, %v1036, %v1102
    %v1135 = vsel %vm1070, %v1037, %v1103
    %v1136 = vsel %vm1071, %v1038, %v1104
    %v1137 = vsel %vm1072, %v1039, %v1105
    %v1138 = vsel %vm1073, %v1040, %v1106
    %v1139 = vpack.c.bf16 %v1108, %v1107
    %v1140 = vpack.c.bf16 %v1110, %v1109
    %v1141 = vpack.c.bf16 %v1112, %v1111
    %v1142 = vpack.c.bf16 %v1114, %v1113
    %v1143 = vpack.c.bf16 %v1116, %v1115
    %v1144 = vpack.c.bf16 %v1118, %v1117
    %v1145 = vpack.c.bf16 %v1120, %v1119
    %v1146 = vpack.c.bf16 %v1122, %v1121
    %v1147 = vpack.c.bf16 %v1124, %v1123
    %v1148 = vpack.c.bf16 %v1126, %v1125
    %v1149 = vpack.c.bf16 %v1128, %v1127
    %v1150 = vpack.c.bf16 %v1130, %v1129
    %v1151 = vpack.c.bf16 %v1132, %v1131
    %v1152 = vpack.c.bf16 %v1134, %v1133
    %v1153 = vpack.c.bf16 %v1136, %v1135
    %v1154 = vpack.c.bf16 %v1138, %v1137
    %v1155 = vld [vmem:[#allocation10] sm:$0xf]
    %v1156 = vld [vmem:[#allocation10 + $0x4] sm:$0xf]
    %v1157 = vld [vmem:[#allocation10 + $0x8] sm:$0xf]
    %v1158 = vld [vmem:[#allocation10 + $0xc] sm:$0xf]
    %v1159 = vld [vmem:[#allocation10 + $0x10] sm:$0xf]
    %v1160 = vld [vmem:[#allocation10 + $0x14] sm:$0xf]
    %v1161 = vld [vmem:[#allocation10 + $0x18] sm:$0xf]
    %v1162 = vld [vmem:[#allocation10 + $0x1c] sm:$0xf]
    %v1163 = vld [vmem:[#allocation10 + $0x20] sm:$0xf]
    %v1164 = vld [vmem:[#allocation10 + $0x24] sm:$0xf]
    %v1165 = vld [vmem:[#allocation10 + $0x28] sm:$0xf]
    %v1166 = vld [vmem:[#allocation10 + $0x2c] sm:$0xf]
    %v1167 = vld [vmem:[#allocation10 + $0x30] sm:$0xf]
    %v1168 = vld [vmem:[#allocation10 + $0x34] sm:$0xf]
    %v1169 = vld [vmem:[#allocation10 + $0x38] sm:$0xf]
    %v1170 = vld [vmem:[#allocation10 + $0x3c] sm:$0xf]
    %v1187 = vunpack.c.l.b16 %v1155
    %v1188 = vunpack.c.l.b16 %v1156
    %v1189 = vunpack.c.l.b16 %v1157
    %v1190 = vunpack.c.l.b16 %v1158
    %v1191 = vunpack.c.l.b16 %v1159
    %v1192 = vunpack.c.l.b16 %v1160
    %v1193 = vunpack.c.l.b16 %v1161
    %v1194 = vunpack.c.l.b16 %v1162
    %v1195 = vunpack.c.l.b16 %v1163
    %v1196 = vunpack.c.l.b16 %v1164
    %v1197 = vunpack.c.l.b16 %v1165
    %v1198 = vunpack.c.l.b16 %v1166
    %v1199 = vunpack.c.l.b16 %v1167
    %v1200 = vunpack.c.l.b16 %v1168
    %v1201 = vunpack.c.l.b16 %v1169
    %v1202 = vunpack.c.l.b16 %v1170
    %v1203 = vpack.c.b16 %v1188, %v1187
    %v1204 = vpack.c.b16 %v1190, %v1189
    %v1205 = vpack.c.b16 %v1192, %v1191
    %v1206 = vpack.c.b16 %v1194, %v1193
    %v1207 = vpack.c.b16 %v1196, %v1195
    %v1208 = vpack.c.b16 %v1198, %v1197
    %v1209 = vpack.c.b16 %v1200, %v1199
    %v1210 = vpack.c.b16 %v1202, %v1201
    %1219 = vmatpush.bf16.msra.mxu0 %v1210
    %1220 = vmatpush.bf16.msra.mxu0 %v1209
    %1221 = vmatpush.bf16.msra.mxu0 %v1208
    %1222 = vmatpush.bf16.msra.mxu0 %v1207
    %1223 = vmatpush.bf16.msra.mxu0 %v1206
    %1224 = vmatpush.bf16.msra.mxu0 %v1205
    %1225 = vmatpush.bf16.msra.mxu0 %v1204
    %1226 = vmatpush.bf16.msra.mxu0 %v1203
    %1227 = vmatmul.bf16.gmra.mxu0 %v1139
    %v1228 = vpop.f32.mrf.mxu0
    %v1229 = vadd.f32 0.0, %v1228
    %v1230 = vpop.f32.mrf.mxu0
    %v1231 = vadd.f32 0.0, %v1230
    %1232 = vmatmul.bf16.gmra.mxu0 %v1140
    %v1233 = vpop.f32.mrf.mxu0
    %v1234 = vadd.f32 0.0, %v1233
    %v1235 = vpop.f32.mrf.mxu0
    %v1236 = vadd.f32 0.0, %v1235
    %1237 = vmatmul.bf16.gmra.mxu0 %v1141
    %v1238 = vpop.f32.mrf.mxu0
    %v1239 = vadd.f32 0.0, %v1238
    %v1240 = vpop.f32.mrf.mxu0
    %v1241 = vadd.f32 0.0, %v1240
    %1242 = vmatmul.bf16.gmra.mxu0 %v1142
    %v1243 = vpop.f32.mrf.mxu0
    %v1244 = vadd.f32 0.0, %v1243
    %v1245 = vpop.f32.mrf.mxu0
    %v1246 = vadd.f32 0.0, %v1245
    %1247 = vmatmul.bf16.gmra.mxu0 %v1143
    %v1248 = vpop.f32.mrf.mxu0
    %v1249 = vadd.f32 0.0, %v1248
    %v1250 = vpop.f32.mrf.mxu0
    %v1251 = vadd.f32 0.0, %v1250
    %1252 = vmatmul.bf16.gmra.mxu0 %v1144
    %v1253 = vpop.f32.mrf.mxu0
    %v1254 = vadd.f32 0.0, %v1253
    %v1255 = vpop.f32.mrf.mxu0
    %v1256 = vadd.f32 0.0, %v1255
    %1257 = vmatmul.bf16.gmra.mxu0 %v1145
    %v1258 = vpop.f32.mrf.mxu0
    %v1259 = vadd.f32 0.0, %v1258
    %v1260 = vpop.f32.mrf.mxu0
    %v1261 = vadd.f32 0.0, %v1260
    %1262 = vmatmul.bf16.gmra.mxu0 %v1146
    %v1263 = vpop.f32.mrf.mxu0
    %v1264 = vadd.f32 0.0, %v1263
    %v1265 = vpop.f32.mrf.mxu0
    %v1266 = vadd.f32 0.0, %v1265
    %1267 = vmatmul.bf16.gmra.mxu0 %v1147
    %v1268 = vpop.f32.mrf.mxu0
    %v1269 = vadd.f32 0.0, %v1268
    %v1270 = vpop.f32.mrf.mxu0
    %v1271 = vadd.f32 0.0, %v1270
    %1272 = vmatmul.bf16.gmra.mxu0 %v1148
    %v1273 = vpop.f32.mrf.mxu0
    %v1274 = vadd.f32 0.0, %v1273
    %v1275 = vpop.f32.mrf.mxu0
    %v1276 = vadd.f32 0.0, %v1275
    %1277 = vmatmul.bf16.gmra.mxu0 %v1149
    %v1278 = vpop.f32.mrf.mxu0
    %v1279 = vadd.f32 0.0, %v1278
    %v1280 = vpop.f32.mrf.mxu0
    %v1281 = vadd.f32 0.0, %v1280
    %1282 = vmatmul.bf16.gmra.mxu0 %v1150
    %v1283 = vpop.f32.mrf.mxu0
    %v1284 = vadd.f32 0.0, %v1283
    %v1285 = vpop.f32.mrf.mxu0
    %v1286 = vadd.f32 0.0, %v1285
    %1287 = vmatmul.bf16.gmra.mxu0 %v1151
    %v1288 = vpop.f32.mrf.mxu0
    %v1289 = vadd.f32 0.0, %v1288
    %v1290 = vpop.f32.mrf.mxu0
    %v1291 = vadd.f32 0.0, %v1290
    %1292 = vmatmul.bf16.gmra.mxu0 %v1152
    %v1293 = vpop.f32.mrf.mxu0
    %v1294 = vadd.f32 0.0, %v1293
    %v1295 = vpop.f32.mrf.mxu0
    %v1296 = vadd.f32 0.0, %v1295
    %1297 = vmatmul.bf16.gmra.mxu0 %v1153
    %v1298 = vpop.f32.mrf.mxu0
    %v1299 = vadd.f32 0.0, %v1298
    %v1300 = vpop.f32.mrf.mxu0
    %v1301 = vadd.f32 0.0, %v1300
    %1302 = vmatmul.bf16.gmra.mxu0 %v1154
    %v1303 = vpop.f32.mrf.mxu0
    %v1304 = vadd.f32 0.0, %v1303
    %v1305 = vpop.f32.mrf.mxu0
    %v1306 = vadd.f32 0.0, %v1305
    %1307 = vdwg.mxu0
    %v1308 = vpack.c.bf16 %v1231, %v1229
    %v1309 = vpack.c.bf16 %v1236, %v1234
    %v1310 = vpack.c.bf16 %v1241, %v1239
    %v1311 = vpack.c.bf16 %v1246, %v1244
    %v1312 = vpack.c.bf16 %v1251, %v1249
    %v1313 = vpack.c.bf16 %v1256, %v1254
    %v1314 = vpack.c.bf16 %v1261, %v1259
    %v1315 = vpack.c.bf16 %v1266, %v1264
    %v1316 = vpack.c.bf16 %v1271, %v1269
    %v1317 = vpack.c.bf16 %v1276, %v1274
    %v1318 = vpack.c.bf16 %v1281, %v1279
    %v1319 = vpack.c.bf16 %v1286, %v1284
    %v1320 = vpack.c.bf16 %v1291, %v1289
    %v1321 = vpack.c.bf16 %v1296, %v1294
    %v1322 = vpack.c.bf16 %v1301, %v1299
    %v1323 = vpack.c.bf16 %v1306, %v1304
    %v1324 = vld [vmem:[%s8] sm:$0x1]
    %v1326 = vperm.slane %v1324, 0
    %1328 = vmatpush.bf16.msra.mxu0 %v1315
    %1329 = vmatpush.bf16.msra.mxu0 %v1314
    %1330 = vmatpush.bf16.msra.mxu0 %v1313
    %1331 = vmatpush.bf16.msra.mxu0 %v1312
    %1332 = vmatpush.bf16.msra.mxu0 %v1311
    %1333 = vmatpush.bf16.msra.mxu0 %v1310
    %1334 = vmatpush.bf16.msra.mxu0 %v1309
    %1335 = vmatpush.bf16.msra.mxu0 %v1308
    %1336 = vmatmul.bf16.gmra.mxu0 %v412
    %v1337 = vpop.f32.mrf.mxu0
    %v1338 = vadd.f32 %v1326, %v1337
    %v1339 = vpop.f32.mrf.mxu0
    %v1340 = vadd.f32 %v1326, %v1339
    %1341 = vmatmul.bf16.gmra.mxu0 %v414
    %v1342 = vpop.f32.mrf.mxu0
    %v1343 = vadd.f32 %v1326, %v1342
    %v1344 = vpop.f32.mrf.mxu0
    %v1345 = vadd.f32 %v1326, %v1344
    %1346 = vmatmul.bf16.gmra.mxu0 %v416
    %v1347 = vpop.f32.mrf.mxu0
    %v1348 = vadd.f32 %v1326, %v1347
    %v1349 = vpop.f32.mrf.mxu0
    %v1350 = vadd.f32 %v1326, %v1349
    %1351 = vmatmul.bf16.gmra.mxu0 %v418
    %v1352 = vpop.f32.mrf.mxu0
    %v1353 = vadd.f32 %v1326, %v1352
    %v1354 = vpop.f32.mrf.mxu0
    %v1355 = vadd.f32 %v1326, %v1354
    %1356 = vmatmul.bf16.gmra.mxu0 %v420
    %v1357 = vpop.f32.mrf.mxu0
    %v1358 = vadd.f32 %v1326, %v1357
    %v1359 = vpop.f32.mrf.mxu0
    %v1360 = vadd.f32 %v1326, %v1359
    %1361 = vmatmul.bf16.gmra.mxu0 %v422
    %v1362 = vpop.f32.mrf.mxu0
    %v1363 = vadd.f32 %v1326, %v1362
    %v1364 = vpop.f32.mrf.mxu0
    %v1365 = vadd.f32 %v1326, %v1364
    %1366 = vmatmul.bf16.gmra.mxu0 %v424
    %v1367 = vpop.f32.mrf.mxu0
    %v1368 = vadd.f32 %v1326, %v1367
    %v1369 = vpop.f32.mrf.mxu0
    %v1370 = vadd.f32 %v1326, %v1369
    %1371 = vmatmul.bf16.gmra.mxu0 %v426
    %v1372 = vpop.f32.mrf.mxu0
    %v1373 = vadd.f32 %v1326, %v1372
    %v1374 = vpop.f32.mrf.mxu0
    %v1375 = vadd.f32 %v1326, %v1374
    %1376 = vmatmul.bf16.gmra.mxu0 %v428
    %v1377 = vpop.f32.mrf.mxu0
    %v1378 = vadd.f32 %v1326, %v1377
    %v1379 = vpop.f32.mrf.mxu0
    %v1380 = vadd.f32 %v1326, %v1379
    %1381 = vmatmul.bf16.gmra.mxu0 %v430
    %v1382 = vpop.f32.mrf.mxu0
    %v1383 = vadd.f32 %v1326, %v1382
    %v1384 = vpop.f32.mrf.mxu0
    %v1385 = vadd.f32 %v1326, %v1384
    %1386 = vmatmul.bf16.gmra.mxu0 %v432
    %v1387 = vpop.f32.mrf.mxu0
    %v1388 = vadd.f32 %v1326, %v1387
    %v1389 = vpop.f32.mrf.mxu0
    %v1390 = vadd.f32 %v1326, %v1389
    %1391 = vmatmul.bf16.gmra.mxu0 %v434
    %v1392 = vpop.f32.mrf.mxu0
    %v1393 = vadd.f32 %v1326, %v1392
    %v1394 = vpop.f32.mrf.mxu0
    %v1395 = vadd.f32 %v1326, %v1394
    %1396 = vmatmul.bf16.gmra.mxu0 %v436
    %v1397 = vpop.f32.mrf.mxu0
    %v1398 = vadd.f32 %v1326, %v1397
    %v1399 = vpop.f32.mrf.mxu0
    %v1400 = vadd.f32 %v1326, %v1399
    %1401 = vmatmul.bf16.gmra.mxu0 %v438
    %v1402 = vpop.f32.mrf.mxu0
    %v1403 = vadd.f32 %v1326, %v1402
    %v1404 = vpop.f32.mrf.mxu0
    %v1405 = vadd.f32 %v1326, %v1404
    %1406 = vmatmul.bf16.gmra.mxu0 %v440
    %v1407 = vpop.f32.mrf.mxu0
    %v1408 = vadd.f32 %v1326, %v1407
    %v1409 = vpop.f32.mrf.mxu0
    %v1410 = vadd.f32 %v1326, %v1409
    %1411 = vmatmul.bf16.gmra.mxu0 %v442
    %v1412 = vpop.f32.mrf.mxu0
    %v1413 = vadd.f32 %v1326, %v1412
    %v1414 = vpop.f32.mrf.mxu0
    %v1415 = vadd.f32 %v1326, %v1414
    %1416 = vdwg.mxu0
    %1417 = vmatpush.bf16.msra.mxu0 %v1323
    %1418 = vmatpush.bf16.msra.mxu0 %v1322
    %1419 = vmatpush.bf16.msra.mxu0 %v1321
    %1420 = vmatpush.bf16.msra.mxu0 %v1320
    %1421 = vmatpush.bf16.msra.mxu0 %v1319
    %1422 = vmatpush.bf16.msra.mxu0 %v1318
    %1423 = vmatpush.bf16.msra.mxu0 %v1317
    %1424 = vmatpush.bf16.msra.mxu0 %v1316
    %1425 = vmatmul.bf16.gmra.mxu0 %v413
    %v1426 = vpop.f32.mrf.mxu0
    %v1427 = vadd.f32 %v1338, %v1426
    %v1428 = vpop.f32.mrf.mxu0
    %v1429 = vadd.f32 %v1340, %v1428
    %1430 = vmatmul.bf16.gmra.mxu0 %v415
    %v1431 = vpop.f32.mrf.mxu0
    %v1432 = vadd.f32 %v1343, %v1431
    %v1433 = vpop.f32.mrf.mxu0
    %v1434 = vadd.f32 %v1345, %v1433
    %1435 = vmatmul.bf16.gmra.mxu0 %v417
    %v1436 = vpop.f32.mrf.mxu0
    %v1437 = vadd.f32 %v1348, %v1436
    %v1438 = vpop.f32.mrf.mxu0
    %v1439 = vadd.f32 %v1350, %v1438
    %1440 = vmatmul.bf16.gmra.mxu0 %v419
    %v1441 = vpop.f32.mrf.mxu0
    %v1442 = vadd.f32 %v1353, %v1441
    %v1443 = vpop.f32.mrf.mxu0
    %v1444 = vadd.f32 %v1355, %v1443
    %1445 = vmatmul.bf16.gmra.mxu0 %v421
    %v1446 = vpop.f32.mrf.mxu0
    %v1447 = vadd.f32 %v1358, %v1446
    %v1448 = vpop.f32.mrf.mxu0
    %v1449 = vadd.f32 %v1360, %v1448
    %1450 = vmatmul.bf16.gmra.mxu0 %v423
    %v1451 = vpop.f32.mrf.mxu0
    %v1452 = vadd.f32 %v1363, %v1451
    %v1453 = vpop.f32.mrf.mxu0
    %v1454 = vadd.f32 %v1365, %v1453
    %1455 = vmatmul.bf16.gmra.mxu0 %v425
    %v1456 = vpop.f32.mrf.mxu0
    %v1457 = vadd.f32 %v1368, %v1456
    %v1458 = vpop.f32.mrf.mxu0
    %v1459 = vadd.f32 %v1370, %v1458
    %1460 = vmatmul.bf16.gmra.mxu0 %v427
    %v1461 = vpop.f32.mrf.mxu0
    %v1462 = vadd.f32 %v1373, %v1461
    %v1463 = vpop.f32.mrf.mxu0
    %v1464 = vadd.f32 %v1375, %v1463
    %1465 = vmatmul.bf16.gmra.mxu0 %v429
    %v1466 = vpop.f32.mrf.mxu0
    %v1467 = vadd.f32 %v1378, %v1466
    %v1468 = vpop.f32.mrf.mxu0
    %v1469 = vadd.f32 %v1380, %v1468
    %1470 = vmatmul.bf16.gmra.mxu0 %v431
    %v1471 = vpop.f32.mrf.mxu0
    %v1472 = vadd.f32 %v1383, %v1471
    %v1473 = vpop.f32.mrf.mxu0
    %v1474 = vadd.f32 %v1385, %v1473
    %1475 = vmatmul.bf16.gmra.mxu0 %v433
    %v1476 = vpop.f32.mrf.mxu0
    %v1477 = vadd.f32 %v1388, %v1476
    %v1478 = vpop.f32.mrf.mxu0
    %v1479 = vadd.f32 %v1390, %v1478
    %1480 = vmatmul.bf16.gmra.mxu0 %v435
    %v1481 = vpop.f32.mrf.mxu0
    %v1482 = vadd.f32 %v1393, %v1481
    %v1483 = vpop.f32.mrf.mxu0
    %v1484 = vadd.f32 %v1395, %v1483
    %1485 = vmatmul.bf16.gmra.mxu0 %v437
    %v1486 = vpop.f32.mrf.mxu0
    %v1487 = vadd.f32 %v1398, %v1486
    %v1488 = vpop.f32.mrf.mxu0
    %v1489 = vadd.f32 %v1400, %v1488
    %1490 = vmatmul.bf16.gmra.mxu0 %v439
    %v1491 = vpop.f32.mrf.mxu0
    %v1492 = vadd.f32 %v1403, %v1491
    %v1493 = vpop.f32.mrf.mxu0
    %v1494 = vadd.f32 %v1405, %v1493
    %1495 = vmatmul.bf16.gmra.mxu0 %v441
    %v1496 = vpop.f32.mrf.mxu0
    %v1497 = vadd.f32 %v1408, %v1496
    %v1498 = vpop.f32.mrf.mxu0
    %v1499 = vadd.f32 %v1410, %v1498
    %1500 = vmatmul.bf16.gmra.mxu0 %v443
    %v1501 = vpop.f32.mrf.mxu0
    %v1502 = vadd.f32 %v1413, %v1501
    %v1503 = vpop.f32.mrf.mxu0
    %v1504 = vadd.f32 %v1415, %v1503
    %1505 = vdwg.mxu0
    %v1506 = vmul.f32 %v1427, %v216
    %v1507 = vmul.f32 %v1429, %v217
    %v1508 = vmul.f32 %v1432, %v218
    %v1509 = vmul.f32 %v1434, %v219
    %v1510 = vmul.f32 %v1437, %v220
    %v1511 = vmul.f32 %v1439, %v221
    %v1512 = vmul.f32 %v1442, %v222
    %v1513 = vmul.f32 %v1444, %v223
    %v1514 = vmul.f32 %v1447, %v224
    %v1515 = vmul.f32 %v1449, %v225
    %v1516 = vmul.f32 %v1452, %v226
    %v1517 = vmul.f32 %v1454, %v227
    %v1518 = vmul.f32 %v1457, %v228
    %v1519 = vmul.f32 %v1459, %v229
    %v1520 = vmul.f32 %v1462, %v230
    %v1521 = vmul.f32 %v1464, %v231
    %v1522 = vmul.f32 %v1467, %v232
    %v1523 = vmul.f32 %v1469, %v233
    %v1524 = vmul.f32 %v1472, %v234
    %v1525 = vmul.f32 %v1474, %v235
    %v1526 = vmul.f32 %v1477, %v236
    %v1527 = vmul.f32 %v1479, %v237
    %v1528 = vmul.f32 %v1482, %v238
    %v1529 = vmul.f32 %v1484, %v239
    %v1530 = vmul.f32 %v1487, %v240
    %v1531 = vmul.f32 %v1489, %v241
    %v1532 = vmul.f32 %v1492, %v242
    %v1533 = vmul.f32 %v1494, %v243
    %v1534 = vmul.f32 %v1497, %v244
    %v1535 = vmul.f32 %v1499, %v245
    %v1536 = vmul.f32 %v1502, %v246
    %v1537 = vmul.f32 %v1504, %v247
    %v1538 = vadd.f32 %v1506, %v1507
    %v1539 = vadd.f32 %v1538, %v1508
    %v1540 = vadd.f32 %v1539, %v1509
    %v1541 = vadd.f32 %v1540, %v1510
    %v1542 = vadd.f32 %v1541, %v1511
    %v1543 = vadd.f32 %v1542, %v1512
    %v1544 = vadd.f32 %v1543, %v1513
    %v1545 = vadd.f32 %v1544, %v1514
    %v1546 = vadd.f32 %v1545, %v1515
    %v1547 = vadd.f32 %v1546, %v1516
    %v1548 = vadd.f32 %v1547, %v1517
    %v1549 = vadd.f32 %v1548, %v1518
    %v1550 = vadd.f32 %v1549, %v1519
    %v1551 = vadd.f32 %v1550, %v1520
    %v1552 = vadd.f32 %v1551, %v1521
    %v1553 = vadd.f32 %v1552, %v1522
    %v1554 = vadd.f32 %v1553, %v1523
    %v1555 = vadd.f32 %v1554, %v1524
    %v1556 = vadd.f32 %v1555, %v1525
    %v1557 = vadd.f32 %v1556, %v1526
    %v1558 = vadd.f32 %v1557, %v1527
    %v1559 = vadd.f32 %v1558, %v1528
    %v1560 = vadd.f32 %v1559, %v1529
    %v1561 = vadd.f32 %v1560, %v1530
    %v1562 = vadd.f32 %v1561, %v1531
    %v1563 = vadd.f32 %v1562, %v1532
    %v1564 = vadd.f32 %v1563, %v1533
    %v1565 = vadd.f32 %v1564, %v1534
    %v1566 = vadd.f32 %v1565, %v1535
    %v1567 = vadd.f32 %v1566, %v1536
    %v1568 = vadd.f32 %v1567, %v1537
    %v1569 = vrot.slane %v1568, 4
    %v1570 = vadd.f32 %v1568, %v1569
    %v1571 = vrot.slane %v1570, 2
    %v1572 = vadd.f32 %v1570, %v1571
    %v1573 = vrot.slane %v1572, 1
    %v1574 = vadd.f32 %v1572, %v1573
    %v1575 = vmul.f32 %v1574, %v819
    %v1576 = vsub.f32 %v1427, %v1575
    %v1577 = vsub.f32 %v1429, %v1575
    %v1578 = vsub.f32 %v1432, %v1575
    %v1579 = vsub.f32 %v1434, %v1575
    %v1580 = vsub.f32 %v1437, %v1575
    %v1581 = vsub.f32 %v1439, %v1575
    %v1582 = vsub.f32 %v1442, %v1575
    %v1583 = vsub.f32 %v1444, %v1575
    %v1584 = vsub.f32 %v1447, %v1575
    %v1585 = vsub.f32 %v1449, %v1575
    %v1586 = vsub.f32 %v1452, %v1575
    %v1587 = vsub.f32 %v1454, %v1575
    %v1588 = vsub.f32 %v1457, %v1575
    %v1589 = vsub.f32 %v1459, %v1575
    %v1590 = vsub.f32 %v1462, %v1575
    %v1591 = vsub.f32 %v1464, %v1575
    %v1592 = vsub.f32 %v1467, %v1575
    %v1593 = vsub.f32 %v1469, %v1575
    %v1594 = vsub.f32 %v1472, %v1575
    %v1595 = vsub.f32 %v1474, %v1575
    %v1596 = vsub.f32 %v1477, %v1575
    %v1597 = vsub.f32 %v1479, %v1575
    %v1598 = vsub.f32 %v1482, %v1575
    %v1599 = vsub.f32 %v1484, %v1575
    %v1600 = vsub.f32 %v1487, %v1575
    %v1601 = vsub.f32 %v1489, %v1575
    %v1602 = vsub.f32 %v1492, %v1575
    %v1603 = vsub.f32 %v1494, %v1575
    %v1604 = vsub.f32 %v1497, %v1575
    %v1605 = vsub.f32 %v1499, %v1575
    %v1606 = vsub.f32 %v1502, %v1575
    %v1607 = vsub.f32 %v1504, %v1575
    %v1608 = vmul.f32 %v1576, %v216
    %v1609 = vmul.f32 %v1577, %v217
    %v1610 = vmul.f32 %v1578, %v218
    %v1611 = vmul.f32 %v1579, %v219
    %v1612 = vmul.f32 %v1580, %v220
    %v1613 = vmul.f32 %v1581, %v221
    %v1614 = vmul.f32 %v1582, %v222
    %v1615 = vmul.f32 %v1583, %v223
    %v1616 = vmul.f32 %v1584, %v224
    %v1617 = vmul.f32 %v1585, %v225
    %v1618 = vmul.f32 %v1586, %v226
    %v1619 = vmul.f32 %v1587, %v227
    %v1620 = vmul.f32 %v1588, %v228
    %v1621 = vmul.f32 %v1589, %v229
    %v1622 = vmul.f32 %v1590, %v230
    %v1623 = vmul.f32 %v1591, %v231
    %v1624 = vmul.f32 %v1592, %v232
    %v1625 = vmul.f32 %v1593, %v233
    %v1626 = vmul.f32 %v1594, %v234
    %v1627 = vmul.f32 %v1595, %v235
    %v1628 = vmul.f32 %v1596, %v236
    %v1629 = vmul.f32 %v1597, %v237
    %v1630 = vmul.f32 %v1598, %v238
    %v1631 = vmul.f32 %v1599, %v239
    %v1632 = vmul.f32 %v1600, %v240
    %v1633 = vmul.f32 %v1601, %v241
    %v1634 = vmul.f32 %v1602, %v242
    %v1635 = vmul.f32 %v1603, %v243
    %v1636 = vmul.f32 %v1604, %v244
    %v1637 = vmul.f32 %v1605, %v245
    %v1638 = vmul.f32 %v1606, %v246
    %v1639 = vmul.f32 %v1607, %v247
    %v1640 = vmul.f32 %v1608, %v1608
    %v1641 = vmul.f32 %v1609, %v1609
    %v1642 = vmul.f32 %v1610, %v1610
    %v1643 = vmul.f32 %v1611, %v1611
    %v1644 = vmul.f32 %v1612, %v1612
    %v1645 = vmul.f32 %v1613, %v1613
    %v1646 = vmul.f32 %v1614, %v1614
    %v1647 = vmul.f32 %v1615, %v1615
    %v1648 = vmul.f32 %v1616, %v1616
    %v1649 = vmul.f32 %v1617, %v1617
    %v1650 = vmul.f32 %v1618, %v1618
    %v1651 = vmul.f32 %v1619, %v1619
    %v1652 = vmul.f32 %v1620, %v1620
    %v1653 = vmul.f32 %v1621, %v1621
    %v1654 = vmul.f32 %v1622, %v1622
    %v1655 = vmul.f32 %v1623, %v1623
    %v1656 = vmul.f32 %v1624, %v1624
    %v1657 = vmul.f32 %v1625, %v1625
    %v1658 = vmul.f32 %v1626, %v1626
    %v1659 = vmul.f32 %v1627, %v1627
    %v1660 = vmul.f32 %v1628, %v1628
    %v1661 = vmul.f32 %v1629, %v1629
    %v1662 = vmul.f32 %v1630, %v1630
    %v1663 = vmul.f32 %v1631, %v1631
    %v1664 = vmul.f32 %v1632, %v1632
    %v1665 = vmul.f32 %v1633, %v1633
    %v1666 = vmul.f32 %v1634, %v1634
    %v1667 = vmul.f32 %v1635, %v1635
    %v1668 = vmul.f32 %v1636, %v1636
    %v1669 = vmul.f32 %v1637, %v1637
    %v1670 = vmul.f32 %v1638, %v1638
    %v1671 = vmul.f32 %v1639, %v1639
    %v1672 = vadd.f32 %v1640, %v1641
    %v1673 = vadd.f32 %v1672, %v1642
    %v1674 = vadd.f32 %v1673, %v1643
    %v1675 = vadd.f32 %v1674, %v1644
    %v1676 = vadd.f32 %v1675, %v1645
    %v1677 = vadd.f32 %v1676, %v1646
    %v1678 = vadd.f32 %v1677, %v1647
    %v1679 = vadd.f32 %v1678, %v1648
    %v1680 = vadd.f32 %v1679, %v1649
    %v1681 = vadd.f32 %v1680, %v1650
    %v1682 = vadd.f32 %v1681, %v1651
    %v1683 = vadd.f32 %v1682, %v1652
    %v1684 = vadd.f32 %v1683, %v1653
    %v1685 = vadd.f32 %v1684, %v1654
    %v1686 = vadd.f32 %v1685, %v1655
    %v1687 = vadd.f32 %v1686, %v1656
    %v1688 = vadd.f32 %v1687, %v1657
    %v1689 = vadd.f32 %v1688, %v1658
    %v1690 = vadd.f32 %v1689, %v1659
    %v1691 = vadd.f32 %v1690, %v1660
    %v1692 = vadd.f32 %v1691, %v1661
    %v1693 = vadd.f32 %v1692, %v1662
    %v1694 = vadd.f32 %v1693, %v1663
    %v1695 = vadd.f32 %v1694, %v1664
    %v1696 = vadd.f32 %v1695, %v1665
    %v1697 = vadd.f32 %v1696, %v1666
    %v1698 = vadd.f32 %v1697, %v1667
    %v1699 = vadd.f32 %v1698, %v1668
    %v1700 = vadd.f32 %v1699, %v1669
    %v1701 = vadd.f32 %v1700, %v1670
    %v1702 = vadd.f32 %v1701, %v1671
    %v1703 = vrot.slane %v1702, 4
    %v1704 = vadd.f32 %v1702, %v1703
    %v1705 = vrot.slane %v1704, 2
    %v1706 = vadd.f32 %v1704, %v1705
    %v1707 = vrot.slane %v1706, 1
    %v1708 = vadd.f32 %v1706, %v1707
    %v1709 = vmul.f32 %v1708, %v819
    %v1710 = vld [vmem:[%s9] sm:$0x1]
    %v1711 = vadd.f32 %v1709, 1e-05
    %v1712 = vrsqrt.pop %v1711
    %v1713 = vmul.f32 %v1712, %v1711
    %v1714 = vmul.f32 %v1713, %v1712
    %v1715 = vmul.f32 0.5, %v1714
    %v1716 = vsub.f32 1.5, %v1715
    %v1717 = vmul.f32 %v1712, %v1716
    %vm1718 = vweird.f32 %v1711
    %vm1719 = vweird.f32 %v1712
    %vm1720 = vmor %vm1718, %vm1719
    %v1721 = vsel %vm1720, %v1712, %v1717
    %v1722 = vmul.f32 %v1710, %v1721
    %v1723 = vld [vmem:[%s10] sm:$0x1]
    %v1724 = vmul.f32 %v1575, %v1722
    %v1725 = vsub.f32 %v1723, %v1724
    %v1727 = vperm.slane %v1722, 0
    %v1729 = vmul.f32 %v1427, %v1727
    %v1730 = vmul.f32 %v1429, %v1727
    %v1731 = vmul.f32 %v1432, %v1727
    %v1732 = vmul.f32 %v1434, %v1727
    %v1733 = vmul.f32 %v1437, %v1727
    %v1734 = vmul.f32 %v1439, %v1727
    %v1735 = vmul.f32 %v1442, %v1727
    %v1736 = vmul.f32 %v1444, %v1727
    %v1737 = vmul.f32 %v1447, %v1727
    %v1738 = vmul.f32 %v1449, %v1727
    %v1739 = vmul.f32 %v1452, %v1727
    %v1740 = vmul.f32 %v1454, %v1727
    %v1741 = vmul.f32 %v1457, %v1727
    %v1742 = vmul.f32 %v1459, %v1727
    %v1743 = vmul.f32 %v1462, %v1727
    %v1744 = vmul.f32 %v1464, %v1727
    %v1745 = vmul.f32 %v1467, %v1727
    %v1746 = vmul.f32 %v1469, %v1727
    %v1747 = vmul.f32 %v1472, %v1727
    %v1748 = vmul.f32 %v1474, %v1727
    %v1749 = vmul.f32 %v1477, %v1727
    %v1750 = vmul.f32 %v1479, %v1727
    %v1751 = vmul.f32 %v1482, %v1727
    %v1752 = vmul.f32 %v1484, %v1727
    %v1753 = vmul.f32 %v1487, %v1727
    %v1754 = vmul.f32 %v1489, %v1727
    %v1755 = vmul.f32 %v1492, %v1727
    %v1756 = vmul.f32 %v1494, %v1727
    %v1757 = vmul.f32 %v1497, %v1727
    %v1758 = vmul.f32 %v1499, %v1727
    %v1759 = vmul.f32 %v1502, %v1727
    %v1760 = vmul.f32 %v1504, %v1727
    %v1762 = vperm.slane %v1725, 0
    %v1764 = vadd.f32 %v1729, %v1762
    %v1765 = vadd.f32 %v1730, %v1762
    %v1766 = vadd.f32 %v1731, %v1762
    %v1767 = vadd.f32 %v1732, %v1762
    %v1768 = vadd.f32 %v1733, %v1762
    %v1769 = vadd.f32 %v1734, %v1762
    %v1770 = vadd.f32 %v1735, %v1762
    %v1771 = vadd.f32 %v1736, %v1762
    %v1772 = vadd.f32 %v1737, %v1762
    %v1773 = vadd.f32 %v1738, %v1762
    %v1774 = vadd.f32 %v1739, %v1762
    %v1775 = vadd.f32 %v1740, %v1762
    %v1776 = vadd.f32 %v1741, %v1762
    %v1777 = vadd.f32 %v1742, %v1762
    %v1778 = vadd.f32 %v1743, %v1762
    %v1779 = vadd.f32 %v1744, %v1762
    %v1780 = vadd.f32 %v1745, %v1762
    %v1781 = vadd.f32 %v1746, %v1762
    %v1782 = vadd.f32 %v1747, %v1762
    %v1783 = vadd.f32 %v1748, %v1762
    %v1784 = vadd.f32 %v1749, %v1762
    %v1785 = vadd.f32 %v1750, %v1762
    %v1786 = vadd.f32 %v1751, %v1762
    %v1787 = vadd.f32 %v1752, %v1762
    %v1788 = vadd.f32 %v1753, %v1762
    %v1789 = vadd.f32 %v1754, %v1762
    %v1790 = vadd.f32 %v1755, %v1762
    %v1791 = vadd.f32 %v1756, %v1762
    %v1792 = vadd.f32 %v1757, %v1762
    %v1793 = vadd.f32 %v1758, %v1762
    %v1794 = vadd.f32 %v1759, %v1762
    %v1795 = vadd.f32 %v1760, %v1762
    %s1796 = sld [smem:[#allocation3 + $0x1]]
    %vm1797 = vcmp.ge.f32.partialorder %v1764, 0.0
    %vm1798 = vcmp.ge.f32.partialorder %v1765, 0.0
    %vm1799 = vcmp.ge.f32.partialorder %v1766, 0.0
    %vm1800 = vcmp.ge.f32.partialorder %v1767, 0.0
    %vm1801 = vcmp.ge.f32.partialorder %v1768, 0.0
    %vm1802 = vcmp.ge.f32.partialorder %v1769, 0.0
    %vm1803 = vcmp.ge.f32.partialorder %v1770, 0.0
    %vm1804 = vcmp.ge.f32.partialorder %v1771, 0.0
    %vm1805 = vcmp.ge.f32.partialorder %v1772, 0.0
    %vm1806 = vcmp.ge.f32.partialorder %v1773, 0.0
    %vm1807 = vcmp.ge.f32.partialorder %v1774, 0.0
    %vm1808 = vcmp.ge.f32.partialorder %v1775, 0.0
    %vm1809 = vcmp.ge.f32.partialorder %v1776, 0.0
    %vm1810 = vcmp.ge.f32.partialorder %v1777, 0.0
    %vm1811 = vcmp.ge.f32.partialorder %v1778, 0.0
    %vm1812 = vcmp.ge.f32.partialorder %v1779, 0.0
    %vm1813 = vcmp.ge.f32.partialorder %v1780, 0.0
    %vm1814 = vcmp.ge.f32.partialorder %v1781, 0.0
    %vm1815 = vcmp.ge.f32.partialorder %v1782, 0.0
    %vm1816 = vcmp.ge.f32.partialorder %v1783, 0.0
    %vm1817 = vcmp.ge.f32.partialorder %v1784, 0.0
    %vm1818 = vcmp.ge.f32.partialorder %v1785, 0.0
    %vm1819 = vcmp.ge.f32.partialorder %v1786, 0.0
    %vm1820 = vcmp.ge.f32.partialorder %v1787, 0.0
    %vm1821 = vcmp.ge.f32.partialorder %v1788, 0.0
    %vm1822 = vcmp.ge.f32.partialorder %v1789, 0.0
    %vm1823 = vcmp.ge.f32.partialorder %v1790, 0.0
    %vm1824 = vcmp.ge.f32.partialorder %v1791, 0.0
    %vm1825 = vcmp.ge.f32.partialorder %v1792, 0.0
    %vm1826 = vcmp.ge.f32.partialorder %v1793, 0.0
    %vm1827 = vcmp.ge.f32.partialorder %v1794, 0.0
    %vm1828 = vcmp.ge.f32.partialorder %v1795, 0.0
    %v1829 = vstv %s1796
    %v1830 = vmul.f32 %v1829, %v1764
    %v1831 = vmul.f32 %v1829, %v1765
    %v1832 = vmul.f32 %v1829, %v1766
    %v1833 = vmul.f32 %v1829, %v1767
    %v1834 = vmul.f32 %v1829, %v1768
    %v1835 = vmul.f32 %v1829, %v1769
    %v1836 = vmul.f32 %v1829, %v1770
    %v1837 = vmul.f32 %v1829, %v1771
    %v1838 = vmul.f32 %v1829, %v1772
    %v1839 = vmul.f32 %v1829, %v1773
    %v1840 = vmul.f32 %v1829, %v1774
    %v1841 = vmul.f32 %v1829, %v1775
    %v1842 = vmul.f32 %v1829, %v1776
    %v1843 = vmul.f32 %v1829, %v1777
    %v1844 = vmul.f32 %v1829, %v1778
    %v1845 = vmul.f32 %v1829, %v1779
    %v1846 = vmul.f32 %v1829, %v1780
    %v1847 = vmul.f32 %v1829, %v1781
    %v1848 = vmul.f32 %v1829, %v1782
    %v1849 = vmul.f32 %v1829, %v1783
    %v1850 = vmul.f32 %v1829, %v1784
    %v1851 = vmul.f32 %v1829, %v1785
    %v1852 = vmul.f32 %v1829, %v1786
    %v1853 = vmul.f32 %v1829, %v1787
    %v1854 = vmul.f32 %v1829, %v1788
    %v1855 = vmul.f32 %v1829, %v1789
    %v1856 = vmul.f32 %v1829, %v1790
    %v1857 = vmul.f32 %v1829, %v1791
    %v1858 = vmul.f32 %v1829, %v1792
    %v1859 = vmul.f32 %v1829, %v1793
    %v1860 = vmul.f32 %v1829, %v1794
    %v1861 = vmul.f32 %v1829, %v1795
    %v1862 = vsel %vm1797, %v1764, %v1830
    %v1863 = vsel %vm1798, %v1765, %v1831
    %v1864 = vsel %vm1799, %v1766, %v1832
    %v1865 = vsel %vm1800, %v1767, %v1833
    %v1866 = vsel %vm1801, %v1768, %v1834
    %v1867 = vsel %vm1802, %v1769, %v1835
    %v1868 = vsel %vm1803, %v1770, %v1836
    %v1869 = vsel %vm1804, %v1771, %v1837
    %v1870 = vsel %vm1805, %v1772, %v1838
    %v1871 = vsel %vm1806, %v1773, %v1839
    %v1872 = vsel %vm1807, %v1774, %v1840
    %v1873 = vsel %vm1808, %v1775, %v1841
    %v1874 = vsel %vm1809, %v1776, %v1842
    %v1875 = vsel %vm1810, %v1777, %v1843
    %v1876 = vsel %vm1811, %v1778, %v1844
    %v1877 = vsel %vm1812, %v1779, %v1845
    %v1878 = vsel %vm1813, %v1780, %v1846
    %v1879 = vsel %vm1814, %v1781, %v1847
    %v1880 = vsel %vm1815, %v1782, %v1848
    %v1881 = vsel %vm1816, %v1783, %v1849
    %v1882 = vsel %vm1817, %v1784, %v1850
    %v1883 = vsel %vm1818, %v1785, %v1851
    %v1884 = vsel %vm1819, %v1786, %v1852
    %v1885 = vsel %vm1820, %v1787, %v1853
    %v1886 = vsel %vm1821, %v1788, %v1854
    %v1887 = vsel %vm1822, %v1789, %v1855
    %v1888 = vsel %vm1823, %v1790, %v1856
    %v1889 = vsel %vm1824, %v1791, %v1857
    %v1890 = vsel %vm1825, %v1792, %v1858
    %v1891 = vsel %vm1826, %v1793, %v1859
    %v1892 = vsel %vm1827, %v1794, %v1860
    %v1893 = vsel %vm1828, %v1795, %v1861
    %1894 = vst [vmem:[#allocation11] sm:$0xff] %v1862
    %1895 = vst [vmem:[#allocation11 + $0x8] sm:$0xff] %v1863
    %1896 = vst [vmem:[#allocation11 + $0x10] sm:$0xff] %v1864
    %1897 = vst [vmem:[#allocation11 + $0x18] sm:$0xff] %v1865
    %1898 = vst [vmem:[#allocation11 + $0x20] sm:$0xff] %v1866
    %1899 = vst [vmem:[#allocation11 + $0x28] sm:$0xff] %v1867
    %1900 = vst [vmem:[#allocation11 + $0x30] sm:$0xff] %v1868
    %1901 = vst [vmem:[#allocation11 + $0x38] sm:$0xff] %v1869
    %1902 = vst [vmem:[#allocation11 + $0x40] sm:$0xff] %v1870
    %1903 = vst [vmem:[#allocation11 + $0x48] sm:$0xff] %v1871
    %1904 = vst [vmem:[#allocation11 + $0x50] sm:$0xff] %v1872
    %1905 = vst [vmem:[#allocation11 + $0x58] sm:$0xff] %v1873
    %1906 = vst [vmem:[#allocation11 + $0x60] sm:$0xff] %v1874
    %1907 = vst [vmem:[#allocation11 + $0x68] sm:$0xff] %v1875
    %1908 = vst [vmem:[#allocation11 + $0x70] sm:$0xff] %v1876
    %1909 = vst [vmem:[#allocation11 + $0x78] sm:$0xff] %v1877
    %1910 = vst [vmem:[#allocation11 + $0x80] sm:$0xff] %v1878
    %1911 = vst [vmem:[#allocation11 + $0x88] sm:$0xff] %v1879
    %1912 = vst [vmem:[#allocation11 + $0x90] sm:$0xff] %v1880
    %1913 = vst [vmem:[#allocation11 + $0x98] sm:$0xff] %v1881
    %1914 = vst [vmem:[#allocation11 + $0xa0] sm:$0xff] %v1882
    %1915 = vst [vmem:[#allocation11 + $0xa8] sm:$0xff] %v1883
    %1916 = vst [vmem:[#allocation11 + $0xb0] sm:$0xff] %v1884
    %1917 = vst [vmem:[#allocation11 + $0xb8] sm:$0xff] %v1885
    %1918 = vst [vmem:[#allocation11 + $0xc0] sm:$0xff] %v1886
    %1919 = vst [vmem:[#allocation11 + $0xc8] sm:$0xff] %v1887
    %1920 = vst [vmem:[#allocation11 + $0xd0] sm:$0xff] %v1888
    %1921 = vst [vmem:[#allocation11 + $0xd8] sm:$0xff] %v1889
    %1922 = vst [vmem:[#allocation11 + $0xe0] sm:$0xff] %v1890
    %1923 = vst [vmem:[#allocation11 + $0xe8] sm:$0xff] %v1891
    %1924 = vst [vmem:[#allocation11 + $0xf0] sm:$0xff] %v1892
    %1925 = vst [vmem:[#allocation11 + $0xf8] sm:$0xff] %v1893
    // Predicated region
    $region62: #{tpu_custom_call.1} parent=1 // pred_check
      _
    $region63: #{tpu_custom_call.1} parent=1 // pred_check_branch
      %1927 = sbr.rel (0) target = $region65
    $region64: #{tpu_custom_call.1} parent=1 // pred_region
      %1929 = vsyncadd [#allocation5], 0
      %s1930 = sshll.u32 [#allocation11], 4
      %s1931 = int_to_ptr.vmem [resolvable:$true] %s1930
      %s1932 = sshll.u32 %s11, 4
      %s1933 = int_to_ptr.hbm [resolvable:$true] %s1932
      %1938 = dma.vmem_to_hbm [thread:$0]  %s1931, 4096, %s1933, [#allocation5], 128, 128, 8
    $region65: #{tpu_custom_call.1} parent=1 // pred_fallthru
      _
    // Predicated region
    $region66: #{tpu_custom_call.1} parent=1 // pred_check
      _
    $region67: #{tpu_custom_call.1} parent=1 // pred_check_branch
      %1940 = sbr.rel (0) target = $region69
    $region68: #{tpu_custom_call.1} parent=1 // pred_region
      %1942 = dma.done [#allocation5], 4096
    $region69: #{tpu_custom_call.1} parent=1 // pred_fallthru
      _
    %1943 = vsyncpa [#allocation4], 1
    %1944 = vsyncpa [#allocation9], 1
    %1945 = vsyncpa [#allocation5], 1
    %1946 = vsyncpa [#allocation6], 1

</llo_original>
